<compile_context>
chip_gen: v7x
topology: tpu7x:2x2x1
jax: 0.10.0
libtpu: 0.0.40
codegen_flags: <defaults>
</compile_context>

<pallas_src>
import numpy as np
import jax
import jax.numpy as jnp
from jax import lax
from jax.experimental import pallas as pl
from jax.experimental.pallas import tpu as pltpu

H = 32          # img_width  (module default h)
W = 32          # img_height (module default w)
C = 32          # conv output channels (fixed by the module)
P = H * W       # 1024 spatial positions -> lane axis inside the kernel
K_TAPS = 19     # 9 cg taps + 9 ext taps + 1 ones-row (bias)

# The module's bmm(ext1, cg1) only type-checks because W == C; make it explicit.
assert H == W == C == 32, "DAF kernel relies on H == W == C (as the PyTorch module does)"


# ----------------------------- Pallas kernel -----------------------------

def daf_kernel(scale_ref, patches_ref, extm_ref, w_ref, o_ref, acc_ref):
    # scale_ref   : (1,)               f32  SMEM scalar = layer_scale_init_value * lamda1
    # patches_ref : (19, b_blk*P)      bf16 rows 0:9 cg taps, 9:18 ext taps, 18 ones (bias)
    # extm_ref    : (b_blk, H, W)      bf16 bmm lhs (ext_lr image)
    # w_ref       : (2C, 19)           bf16 packed conv weights (+ bias column)
    # o_ref       : (b_blk, C, P)      f32  output block
    # acc_ref     : (2C, b_blk*P)      f32  VMEM scratch (batched conv result)
    scale = scale_ref[0]

    # One batched MXU matmul for conv_1 (rows 0:C) and conv_2 (rows C:2C) over the
    # whole batch block; bias folded via the ones row; ReLU fused on the drain.
    acc_ref[...] = jnp.maximum(
        jnp.dot(w_ref[...], patches_ref[...], preferred_element_type=jnp.float32),
        0.0)

    b_blk = o_ref.shape[0]

    def per_image(j, carry):
        col = pl.multiple_of(j * P, P)                              # 128-lane aligned
        conv1 = acc_ref[0:C, pl.ds(col, P)].astype(jnp.bfloat16)    # (C, P)
        conv2 = acc_ref[C:2 * C, pl.ds(col, P)]                     # (C, P) f32
        # bmm(ext1, cg1): (H, W) @ (C, P) with W == C; scale folded into the tiny lhs.
        lhs = (extm_ref[j] * scale).astype(jnp.bfloat16)            # (H, W)
        bmm = jnp.dot(lhs, conv1, preferred_element_type=jnp.float32)
        o_ref[j] = bmm + conv2                                      # lane-dense (C, P) store
        return carry

    lax.fori_loop(0, b_blk, per_image, 0)


def _pick_batch_block(bs):
    # Amortize per-step overhead with big blocks (<=16 keeps per-step VMEM ~9 MiB,
    # under even v5e's 16 MiB default scoped limit); prefer >= 2 grid steps when
    # possible so both v7x TensorCores get work.
    for cand in (16, 8, 4, 2):
        if bs % cand == 0 and bs // cand >= 2:
            return cand
    for cand in (16, 8, 4, 2):
        if bs % cand == 0:
            return cand
    return 1


def daf_pallas(patches, extm, w_pack, scale):
    bs = extm.shape[0]
    b_blk = _pick_batch_block(bs)
    grid = (bs // b_blk,)
    return pl.pallas_call(
        daf_kernel,
        out_shape=jax.ShapeDtypeStruct((bs, C, P), jnp.float32),
        grid=grid,
        in_specs=[
            pl.BlockSpec(memory_space=pltpu.MemorySpace.SMEM),        # scale (1,)
            pl.BlockSpec((K_TAPS, b_blk * P), lambda i: (0, i)),      # packed patches
            pl.BlockSpec((b_blk, H, W), lambda i: (i, 0, 0)),         # ext_lr image (bmm lhs)
            pl.BlockSpec((2 * C, K_TAPS), lambda i: (0, 0)),          # packed weights (fetched once)
        ],
        out_specs=pl.BlockSpec((b_blk, C, P), lambda i: (i, 0, 0)),
        scratch_shapes=[pltpu.VMEM((2 * C, b_blk * P), jnp.float32)],
        compiler_params=pltpu.CompilerParams(
            dimension_semantics=("parallel",),
            vmem_limit_bytes=32 * 1024 * 1024),
    )(scale, patches, extm, w_pack)


# ------------------------------ model wrapper ------------------------------

def _taps9(img):
    # img: (bs, H, W) -> (9, bs, H*W); tap order t = ky*3 + kx (matches OIHW reshape).
    bs = img.shape[0]
    pad = jnp.pad(img, ((0, 0), (1, 1), (1, 1)))
    rows = [pad[:, dy:dy + H, dx:dx + W].reshape(bs, P)
            for dy in range(3) for dx in range(3)]
    return jnp.stack(rows, axis=0)


def _pack_patches(cg_img, ext_img):
    # -> (19, bs*P) bf16 : rows 0:9 cg taps (shared by conv_1 and conv_2's cg channel),
    # rows 9:18 ext_lr taps, row 18 ones (bias).  Contiguous reshape so the kernel's
    # (19, b_blk*P) lane-dense block needs no in-kernel relayout.
    bs = cg_img.shape[0]
    t = jnp.concatenate([_taps9(cg_img), _taps9(ext_img),
                         jnp.ones((1, bs, P), cg_img.dtype)], axis=0)     # (19, bs, P)
    return t.reshape(K_TAPS, bs * P).astype(jnp.bfloat16)


def _pack_weights(params):
    # -> (2C, 19) bf16 : [conv_1 taps | zeros | conv_1 bias] over [conv_2 cg | ext | bias]
    w1 = params["conv1_w"].reshape(C, 9)
    w2_cg = params["conv2_w"][:, 0].reshape(C, 9)
    w2_ext = params["conv2_w"][:, 1].reshape(C, 9)
    top = jnp.concatenate([w1, jnp.zeros((C, 9), w1.dtype),
                           params["conv1_b"].reshape(C, 1)], axis=1)      # (C, 19)
    bot = jnp.concatenate([w2_cg, w2_ext,
                           params["conv2_b"].reshape(C, 1)], axis=1)      # (C, 19)
    return jnp.concatenate([top, bot], axis=0).astype(jnp.bfloat16)       # (2C, 19)


def daf_forward(cg, ext, params):
    bs = cg.shape[0]
    # embedding lookups + feature concat (gathers, XLA glue)
    e1 = params["embed_day"][ext[:, 4].astype(jnp.int32)]        # (bs, 2)
    e2 = params["embed_hour"][ext[:, 5].astype(jnp.int32)]       # (bs, 3)
    e3 = params["embed_weather"][ext[:, 6].astype(jnp.int32)]    # (bs, 3)
    feats = jnp.concatenate([e1, e2, e3, ext[:, :4]], axis=1)    # (bs, 12)

    # ext2lr MLP: Linear(12,128) -> Dropout -> ReLU -> Linear(128,1024) -> ReLU.
    # Left to XLA per perf review (cheaper than a separate no-grid pallas_call).
    # TODO(synk): nn.Dropout(0.3) is identity at inference; training-mode dropout not implemented.
    h1 = jax.nn.relu(feats @ params["lin1_w"] + params["lin1_b"])
    ext_lr = jax.nn.relu(h1 @ params["lin2_w"] + params["lin2_b"])   # (bs, H*W)
    ext_img = ext_lr.reshape(bs, H, W)

    patches = _pack_patches(cg[:, 0], ext_img)                       # (19, bs*P) bf16
    w_pack = _pack_weights(params)                                   # (2C, 19)  bf16
    extm = ext_img.astype(jnp.bfloat16)                              # (bs, H, W) bf16
    scale = (params["layer_scale_init_value"] * params["lamda1"]).reshape(1).astype(jnp.float32)

    out = daf_pallas(patches, extm, w_pack, scale)                   # (bs, C, P) f32
    return out.reshape(bs, C, H, W)                                  # NCHW, free reshape


# --------------------------- pure-JAX reference ---------------------------

def reference_forward(cg, ext, params):
    bs = cg.shape[0]
    e1 = params["embed_day"][ext[:, 4].astype(jnp.int32)]
    e2 = params["embed_hour"][ext[:, 5].astype(jnp.int32)]
    e3 = params["embed_weather"][ext[:, 6].astype(jnp.int32)]
    feats = jnp.concatenate([e1, e2, e3, ext[:, :4]], axis=1)
    h1 = jax.nn.relu(feats @ params["lin1_w"] + params["lin1_b"])
    lr = jax.nn.relu(h1 @ params["lin2_w"] + params["lin2_b"])
    ext_lr1 = lr.reshape(bs, 1, H, W)

    def conv(x, w, b):
        y = lax.conv_general_dilated(x, w, (1, 1), "SAME",
                                     dimension_numbers=("NCHW", "OIHW", "NCHW"))
        return jax.nn.relu(y + b[None, :, None, None])

    c1 = conv(cg, params["conv1_w"], params["conv1_b"])
    cg1 = c1.reshape(bs, C, H * W)
    ext1 = ext_lr1.reshape(bs, H, W)
    inp = jnp.concatenate([cg, ext_lr1], axis=1)
    c2 = conv(inp, params["conv2_w"], params["conv2_b"])
    scale = params["layer_scale_init_value"] * params["lamda1"]
    bmm = jnp.einsum("bij,bjk->bik", ext1, cg1)
    return (scale * bmm).reshape(bs, C, H, W) + c2


# --------------------------------- params ---------------------------------

def init_params(key):
    ks = jax.random.split(key, 11)
    u = lambda k, shape, bound: jax.random.uniform(k, shape, jnp.float32, -bound, bound)
    p = {}
    p["embed_day"] = jax.random.normal(ks[0], (8, 2), jnp.float32)
    p["embed_hour"] = jax.random.normal(ks[1], (24, 3), jnp.float32)
    p["embed_weather"] = jax.random.normal(ks[2], (18, 3), jnp.float32)
    b_l1 = 1.0 / np.sqrt(12.0)
    p["lin1_w"] = u(ks[3], (12, 128), b_l1)
    p["lin1_b"] = u(ks[4], (128,), b_l1)
    b_l2 = 1.0 / np.sqrt(128.0)
    p["lin2_w"] = u(ks[5], (128, H * W), b_l2)
    p["lin2_b"] = u(ks[6], (H * W,), b_l2)
    b_c1 = 1.0 / np.sqrt(1 * 3 * 3)
    p["conv1_w"] = u(ks[7], (C, 1, 3, 3), b_c1)   # OIHW
    p["conv1_b"] = u(ks[8], (C,), b_c1)
    b_c2 = 1.0 / np.sqrt(2 * 3 * 3)
    p["conv2_w"] = u(ks[9], (C, 2, 3, 3), b_c2)   # OIHW
    p["conv2_b"] = u(ks[10], (C,), b_c2)
    p["layer_scale_init_value"] = jnp.float32(1e-6)
    p["lamda1"] = jnp.full((1,), 1e-6, jnp.float32)   # lamda1 init = lsiv * ones(1)
    return p


if __name__ == "__main__":
    key = jax.random.PRNGKey(0)
    kp, kc, ke, kd, kh, kw = jax.random.split(key, 6)
    params = init_params(kp)

    bs = 2
    cg = jax.random.normal(kc, (bs, 1, H, W), jnp.float32)
    cont = jax.random.normal(ke, (bs, 4), jnp.float32)
    day = jax.random.randint(kd, (bs, 1), 0, 8).astype(jnp.float32)
    hour = jax.random.randint(kh, (bs, 1), 0, 24).astype(jnp.float32)
    weather = jax.random.randint(kw, (bs, 1), 0, 18).astype(jnp.float32)
    ext = jnp.concatenate([cont, day, hour, weather], axis=1)    # (bs, 7)

    fwd = jax.jit(daf_forward)
    out = jax.block_until_ready(fwd(cg, ext, params))
    ref = jax.block_until_ready(reference_forward(cg, ext, params))

    assert out.shape == (bs, C, H, W) and out.dtype == jnp.float32
    # bf16 conv/bmm operands (f32 accumulation) -> tolerance loosened vs. the
    # previous all-f32 version, per the perf review's correctness note.
    np.testing.assert_allclose(np.asarray(out), np.asarray(ref), rtol=3e-2, atol=3e-2)
    print("KERNEL_OK")
</pallas_src>

<mosaic_0001>
module attributes {stable_mosaic.version = 11 : i64} {
  func.func @daf_kernel(%arg0: i32, %arg1: memref<1xf32, #tpu.memory_space<smem>>, %arg2: memref<19x2048xbf16, #tpu.memory_space<vmem>>, %arg3: memref<2x32x32xbf16, #tpu.memory_space<vmem>>, %arg4: memref<64x19xbf16, #tpu.memory_space<vmem>>, %arg5: memref<2x32x1024xf32, #tpu.memory_space<vmem>>, %arg6: memref<64x2048xf32, #tpu.memory_space<vmem>>) attributes {dimension_semantics = [#tpu.dimension_semantics<parallel>], iteration_bounds = array<i64: 1>, scalar_prefetch = 0 : i64, scratch_operands = 1 : i64, tpu.core_type = #tpu.core_type<tc>, window_params = [{transform_indices = @transform_0, window_bounds = array<i64: 1>}, {transform_indices = @transform_1, window_bounds = array<i64: 19, 2048>}, {transform_indices = @transform_2, window_bounds = array<i64: 2, 32, 32>}, {pipeline_mode = #tpu.pipeline_mode<synchronous>, transform_indices = @transform_3, window_bounds = array<i64: 64, 19>}, {transform_indices = @transform_4, window_bounds = array<i64: 2, 32, 1024>}]} {
    %c0 = arith.constant 0 : index
    %0 = memref.load %arg1[%c0] : memref<1xf32, #tpu.memory_space<smem>>
    %c0_0 = arith.constant 0 : index
    %c0_1 = arith.constant 0 : index
    %1 = vector.load %arg4[%c0_0, %c0_1] : memref<64x19xbf16, #tpu.memory_space<vmem>>, vector<64x19xbf16>
    %c0_2 = arith.constant 0 : index
    %c0_3 = arith.constant 0 : index
    %2 = vector.load %arg2[%c0_2, %c0_3] : memref<19x2048xbf16, #tpu.memory_space<vmem>>, vector<19x2048xbf16>
    %cst = arith.constant dense<0.000000e+00> : vector<64x2048xf32>
    %3 = tpu.matmul %1, %2, %cst {dimension_numbers = #tpu.dot_dimension_numbers<[1], [0], [0], [1], [0, 0, 1, 1], [], []>} : vector<64x19xbf16>, vector<19x2048xbf16>, vector<64x2048xf32> -> vector<64x2048xf32>
    %cst_4 = arith.constant 0.000000e+00 : f32
    %4 = vector.broadcast %cst_4 : f32 to vector<64x2048xf32>
    %5 = arith.maximumf %3, %4 : vector<64x2048xf32>
    %c0_5 = arith.constant 0 : index
    %c0_6 = arith.constant 0 : index
    %6 = vector.load %arg6[%c0_5, %c0_6] : memref<64x2048xf32, #tpu.memory_space<vmem>>, vector<64x2048xf32>
    tpu.vector_store %arg6[%c0_5, %c0_6], %5 {strides = array<i32>} : memref<64x2048xf32, #tpu.memory_space<vmem>>, vector<64x2048xf32>,
    %c0_i32 = arith.constant 0 : i32
    %c2_i32 = arith.constant 2 : i32
    %7 = arith.addi %c0_i32, %c2_i32 : i32
    %c1_i32 = arith.constant 1 : i32
    scf.for %arg7 = %c0_i32 to %7 step %c1_i32  : i32 {
      %c1024_i32 = arith.constant 1024 : i32
      %8 = arith.muli %arg7, %c1024_i32 : i32
      %9 = tpu.assume_multiple %8, 1024 : i32
      %c0_8 = arith.constant 0 : index
      %10 = arith.index_cast %9 : i32 to index
      %11 = vector.load %arg6[%c0_8, %10] : memref<64x2048xf32, #tpu.memory_space<vmem>>, vector<32x1024xf32>
      %12 = arith.truncf %11 : vector<32x1024xf32> to vector<32x1024xbf16>
      %c32 = arith.constant 32 : index
      %13 = arith.index_cast %9 : i32 to index
      %14 = vector.load %arg6[%c32, %13] : memref<64x2048xf32, #tpu.memory_space<vmem>>, vector<32x1024xf32>
      %15 = arith.index_cast %arg7 : i32 to index
      %c0_9 = arith.constant 0 : index
      %c0_10 = arith.constant 0 : index
      %16 = vector.load %arg3[%15, %c0_9, %c0_10] : memref<2x32x32xbf16, #tpu.memory_space<vmem>>, vector<1x32x32xbf16>
      %17 = vector.shape_cast %16 : vector<1x32x32xbf16> to vector<32x32xbf16>
      %18 = arith.extf %17 : vector<32x32xbf16> to vector<32x32xf32>
      %19 = vector.broadcast %0 : f32 to vector<32x32xf32>
      %20 = arith.mulf %18, %19 : vector<32x32xf32>
      %21 = arith.truncf %20 : vector<32x32xf32> to vector<32x32xbf16>
      %cst_11 = arith.constant dense<0.000000e+00> : vector<32x1024xf32>
      %22 = tpu.matmul %21, %12, %cst_11 {dimension_numbers = #tpu.dot_dimension_numbers<[1], [0], [0], [1], [0, 0, 1, 1], [], []>} : vector<32x32xbf16>, vector<32x1024xbf16>, vector<32x1024xf32> -> vector<32x1024xf32>
      %23 = arith.addf %22, %14 : vector<32x1024xf32>
      %24 = arith.index_cast %arg7 : i32 to index
      %c0_12 = arith.constant 0 : index
      %c0_13 = arith.constant 0 : index
      %25 = vector.load %arg5[%24, %c0_12, %c0_13] : memref<2x32x1024xf32, #tpu.memory_space<vmem>>, vector<1x32x1024xf32>
      %26 = vector.shape_cast %25 : vector<1x32x1024xf32> to vector<32x1024xf32>
      %27 = vector.shape_cast %23 : vector<32x1024xf32> to vector<1x32x1024xf32>
      tpu.vector_store %arg5[%24, %c0_12, %c0_13], %27 {strides = array<i32>} : memref<2x32x1024xf32, #tpu.memory_space<vmem>>, vector<1x32x1024xf32>,
    }
    %c2_i32_7 = arith.constant 2 : i32
    return
  }
  func.func @transform_0(%arg0: i32) -> i32 {
    %c0_i32 = arith.constant 0 : i32
    %c0_i32_0 = arith.constant 0 : i32
    return %c0_i32 : i32
  }
  func.func @transform_1(%arg0: i32) -> (i32, i32) {
    %c0_i32 = arith.constant 0 : i32
    %c0_i32_0 = arith.constant 0 : i32
    return %c0_i32, %arg0 : i32, i32
  }
  func.func @transform_2(%arg0: i32) -> (i32, i32, i32) {
    %c0_i32 = arith.constant 0 : i32
    %c0_i32_0 = arith.constant 0 : i32
    %c0_i32_1 = arith.constant 0 : i32
    return %arg0, %c0_i32, %c0_i32_0 : i32, i32, i32
  }
  func.func @transform_3(%arg0: i32) -> (i32, i32) {
    %c0_i32 = arith.constant 0 : i32
    %c0_i32_0 = arith.constant 0 : i32
    %c0_i32_1 = arith.constant 0 : i32
    return %c0_i32, %c0_i32_0 : i32, i32
  }
  func.func @transform_4(%arg0: i32) -> (i32, i32, i32) {
    %c0_i32 = arith.constant 0 : i32
    %c0_i32_0 = arith.constant 0 : i32
    %c0_i32_1 = arith.constant 0 : i32
    return %arg0, %c0_i32, %c0_i32_0 : i32, i32, i32
  }
}

</mosaic_0001>

<llo_original>
// kernel: daf_forward.1
$region0: #{daf_forward.1}
  #allocation0 [shape = 'u32[]', space=smem, size = 0x4, offset = 0x4, fixed_abs, tag = 'smem constant byte address 0x4 - core index']
  #allocation1 [shape = 'u32[144,128]{1,0:T(1,128)}', space=vmem, size = 0x12000, scoped, tag = 'internal scratch']
  #allocation2 [shape = 'f32[64,2048]{1,0:T(8,128)}', space=vmem, size = 0x80000, scoped, tag = 'scratch operand']
  #allocation3 [shape = 'f32[1]{0:T(128)S(6)}', space=smem, size = 0x200, scoped, tag = 'scoped memory for daf_forward.1']
  %s0 = inlined_call_operand.<no memory space> [shape: f32[1], index: 0, kind: input, shape index: {}]
  %s1 = inlined_call_operand.vmem [shape: bf16[19,2048], index: 1, kind: input, shape index: {}]
  %s2 = inlined_call_operand.vmem [shape: bf16[2,32,32], index: 2, kind: input, shape index: {}]
  %s3 = inlined_call_operand.vmem [shape: bf16[64,19], index: 3, kind: input, shape index: {}]
  %s4 = inlined_call_operand.vmem [shape: f32[2,32,1024], index: 4, kind: output, shape index: {}]
  %s5 = sld [smem:[#allocation0]]
  $region33: #{daf_forward.1} parent=0
    _
  %s7 = ssub.s32 1, %s5
  %s8 = scalar_select 0, %s7, %s5
  %9 = sst [smem:[#allocation3]] %s0
  // Predicated region
  $region2: #{daf_forward.1} parent=0 // pred_check
    _
  $region3: #{daf_forward.1} parent=0 // pred_check_branch
    %11 = sbr.rel (0) target = $region5
  $region4: #{daf_forward.1} parent=0 // pred_region
    _
  $region5: #{daf_forward.1} parent=0 // pred_fallthru
    _
  // Predicated region
  $region6: #{daf_forward.1} parent=0 // pred_check
    _
  $region7: #{daf_forward.1} parent=0 // pred_check_branch
    %13 = sbr.rel (0) target = $region9
  $region8: #{daf_forward.1} parent=0 // pred_region
    _
  $region9: #{daf_forward.1} parent=0 // pred_fallthru
    _
  // Predicated region
  $region10: #{daf_forward.1} parent=0 // pred_check
    _
  $region11: #{daf_forward.1} parent=0 // pred_check_branch
    %15 = sbr.rel (0) target = $region13
  $region12: #{daf_forward.1} parent=0 // pred_region
    _
  $region13: #{daf_forward.1} parent=0 // pred_fallthru
    _
  // Predicated region
  $region14: #{daf_forward.1} parent=0 // pred_check
    _
  $region15: #{daf_forward.1} parent=0 // pred_check_branch
    %17 = sbr.rel (0) target = $region17
  $region16: #{daf_forward.1} parent=0 // pred_region
    _
  $region17: #{daf_forward.1} parent=0 // pred_fallthru
    _
  %s19 = sld [smem:[#allocation3]]
  %v20 = vld [vmem:[%s3] sm:$0xf]
  %v21 = vld [vmem:[%s3 + $0x4] sm:$0xf]
  %v22 = vld [vmem:[%s3 + $0x8] sm:$0xf]
  %v23 = vld [vmem:[%s3 + $0xc] sm:$0xf]
  %v24 = vld [vmem:[%s3 + $0x10] sm:$0xf]
  %v25 = vld [vmem:[%s3 + $0x14] sm:$0xf]
  %v26 = vld [vmem:[%s3 + $0x18] sm:$0xf]
  %v27 = vld [vmem:[%s3 + $0x1c] sm:$0xf]
  %v28 = vld [vmem:[%s1] sm:$0xff]
  %v29 = vld [vmem:[%s1 + $0x8] sm:$0xff]
  %v30 = vld [vmem:[%s1 + $0x10] sm:$0xff]
  %v31 = vld [vmem:[%s1 + $0x18] sm:$0xff]
  %v32 = vld [vmem:[%s1 + $0x20] sm:$0xff]
  %v33 = vld [vmem:[%s1 + $0x28] sm:$0xff]
  %v34 = vld [vmem:[%s1 + $0x30] sm:$0xff]
  %v35 = vld [vmem:[%s1 + $0x38] sm:$0xff]
  %v36 = vld [vmem:[%s1 + $0x40] sm:$0xff]
  %v37 = vld [vmem:[%s1 + $0x48] sm:$0xff]
  %v38 = vld [vmem:[%s1 + $0x50] sm:$0xff]
  %v39 = vld [vmem:[%s1 + $0x58] sm:$0xff]
  %v40 = vld [vmem:[%s1 + $0x60] sm:$0xff]
  %v41 = vld [vmem:[%s1 + $0x68] sm:$0xff]
  %v42 = vld [vmem:[%s1 + $0x70] sm:$0xff]
  %v43 = vld [vmem:[%s1 + $0x78] sm:$0xff]
  %v44 = vld [vmem:[%s1 + $0x80] sm:$0x33]
  %v45 = vld [vmem:[%s1 + $0x88] sm:$0x33]
  %v46 = vld [vmem:[%s1 + $0x90] sm:$0x33]
  %v47 = vld [vmem:[%s1 + $0x98] sm:$0x33]
  %v48 = vld [vmem:[%s1 + $0xa0] sm:$0x33]
  %v49 = vld [vmem:[%s1 + $0xa8] sm:$0x33]
  %v50 = vld [vmem:[%s1 + $0xb0] sm:$0x33]
  %v51 = vld [vmem:[%s1 + $0xb8] sm:$0x33]
  %v60 = vunpack.c.l.b16 %v20
  %v61 = vunpack.c.l.b16 %v21
  %v62 = vunpack.c.l.b16 %v22
  %v63 = vunpack.c.l.b16 %v23
  %v64 = vunpack.c.l.b16 %v24
  %v65 = vunpack.c.l.b16 %v25
  %v66 = vunpack.c.l.b16 %v26
  %v67 = vunpack.c.l.b16 %v27
  %v68 = vpack.c.b16 %v61, %v60
  %v69 = vpack.c.b16 %v63, %v62
  %v70 = vpack.c.b16 %v65, %v64
  %v71 = vpack.c.b16 %v67, %v66
  %v96 = vunpack.c.l.b16 %v28
  %v97 = vunpack.c.h.b16 %v28
  %v98 = vunpack.c.l.b16 %v29
  %v99 = vunpack.c.h.b16 %v29
  %v100 = vunpack.c.l.b16 %v30
  %v101 = vunpack.c.h.b16 %v30
  %v102 = vunpack.c.l.b16 %v31
  %v103 = vunpack.c.h.b16 %v31
  %v104 = vunpack.c.l.b16 %v32
  %v105 = vunpack.c.h.b16 %v32
  %v106 = vunpack.c.l.b16 %v33
  %v107 = vunpack.c.h.b16 %v33
  %v108 = vunpack.c.l.b16 %v34
  %v109 = vunpack.c.h.b16 %v34
  %v110 = vunpack.c.l.b16 %v35
  %v111 = vunpack.c.h.b16 %v35
  %v112 = vunpack.c.l.b16 %v36
  %v113 = vunpack.c.h.b16 %v36
  %v114 = vunpack.c.l.b16 %v37
  %v115 = vunpack.c.h.b16 %v37
  %v116 = vunpack.c.l.b16 %v38
  %v117 = vunpack.c.h.b16 %v38
  %v118 = vunpack.c.l.b16 %v39
  %v119 = vunpack.c.h.b16 %v39
  %v120 = vunpack.c.l.b16 %v40
  %v121 = vunpack.c.h.b16 %v40
  %v122 = vunpack.c.l.b16 %v41
  %v123 = vunpack.c.h.b16 %v41
  %v124 = vunpack.c.l.b16 %v42
  %v125 = vunpack.c.h.b16 %v42
  %v126 = vunpack.c.l.b16 %v43
  %v127 = vunpack.c.h.b16 %v43
  %v128 = vunpack.c.l.b16 %v44
  %v129 = vunpack.c.h.b16 %v44
  %v130 = vunpack.c.l.b16 %v45
  %v131 = vunpack.c.h.b16 %v45
  %v132 = vunpack.c.l.b16 %v46
  %v133 = vunpack.c.h.b16 %v46
  %v134 = vunpack.c.l.b16 %v47
  %v135 = vunpack.c.h.b16 %v47
  %v136 = vunpack.c.l.b16 %v48
  %v137 = vunpack.c.h.b16 %v48
  %v138 = vunpack.c.l.b16 %v49
  %v139 = vunpack.c.h.b16 %v49
  %v140 = vunpack.c.l.b16 %v50
  %v141 = vunpack.c.h.b16 %v50
  %v142 = vunpack.c.l.b16 %v51
  %v143 = vunpack.c.h.b16 %v51
  %v144 = vpack.c.b16 %v112, %v96
  %v145 = vpack.c.b16 %v113, %v97
  %v146 = vpack.c.b16 %v114, %v98
  %v147 = vpack.c.b16 %v115, %v99
  %v148 = vpack.c.b16 %v116, %v100
  %v149 = vpack.c.b16 %v117, %v101
  %v150 = vpack.c.b16 %v118, %v102
  %v151 = vpack.c.b16 %v119, %v103
  %v152 = vpack.c.b16 %v120, %v104
  %v153 = vpack.c.b16 %v121, %v105
  %v154 = vpack.c.b16 %v122, %v106
  %v155 = vpack.c.b16 %v123, %v107
  %v156 = vpack.c.b16 %v124, %v108
  %v157 = vpack.c.b16 %v125, %v109
  %v158 = vpack.c.b16 %v126, %v110
  %v159 = vpack.c.b16 %v127, %v111
  %v160 = vpack.c.b16 %v128, %v128
  %v161 = vpack.c.b16 %v129, %v129
  %v162 = vpack.c.b16 %v130, %v130
  %v163 = vpack.c.b16 %v131, %v131
  %v164 = vpack.c.b16 %v132, %v132
  %v165 = vpack.c.b16 %v133, %v133
  %v166 = vpack.c.b16 %v134, %v134
  %v167 = vpack.c.b16 %v135, %v135
  %v168 = vpack.c.b16 %v136, %v136
  %v169 = vpack.c.b16 %v137, %v137
  %v170 = vpack.c.b16 %v138, %v138
  %v171 = vpack.c.b16 %v139, %v139
  %v172 = vpack.c.b16 %v140, %v140
  %v173 = vpack.c.b16 %v141, %v141
  %v174 = vpack.c.b16 %v142, %v142
  %v175 = vpack.c.b16 %v143, %v143
  %vm192 = vcmask 154624
  %v194 = vsel %vm192, %v68, 0
  %v197 = vsel %vm192, %v69, 0
  %v200 = vsel %vm192, %v70, 0
  %v203 = vsel %vm192, %v71, 0
  %vm205 = vcmask 1040384
  %vm206 = vcmask 1041408
  %v207 = vsel %vm205, 4294967295, 65535
  %v208 = vsel %vm206, %v207, 0
  %v210 = vand.u32 %v160, %v208
  %v213 = vand.u32 %v161, %v208
  %v216 = vand.u32 %v162, %v208
  %v219 = vand.u32 %v163, %v208
  %v222 = vand.u32 %v164, %v208
  %v225 = vand.u32 %v165, %v208
  %v228 = vand.u32 %v166, %v208
  %v231 = vand.u32 %v167, %v208
  %v234 = vand.u32 %v168, %v208
  %v237 = vand.u32 %v169, %v208
  %v240 = vand.u32 %v170, %v208
  %v243 = vand.u32 %v171, %v208
  %v246 = vand.u32 %v172, %v208
  %v249 = vand.u32 %v173, %v208
  %v252 = vand.u32 %v174, %v208
  %v255 = vand.u32 %v175, %v208
  %257 = vmatprep.subr.bf16.mxu0 %v145
  %258 = vmatpush1.bf16.msra.mxu0 %v144
  %259 = vmatprep.subr.bf16.mxu0 %v213
  %260 = vmatpush1.bf16.msra.mxu0 %v210
  %261 = vmatprep.subr.bf16.mxu0 0
  %262 = vmatpush1.bf16.msra.mxu0 0
  %263 = vmatprep.subr.bf16.mxu0 0
  %264 = vmatpush1.bf16.msra.mxu0 0
  %265 = vmatprep.subr.bf16.mxu0 0
  %266 = vmatpush1.bf16.msra.mxu0 0
  %267 = vmatprep.subr.bf16.mxu0 0
  %268 = vmatpush1.bf16.msra.mxu0 0
  %269 = vmatprep.subr.bf16.mxu0 0
  %270 = vmatpush1.bf16.msra.mxu0 0
  %271 = vmatprep.subr.bf16.mxu0 0
  %272 = vmatpush1.bf16.msra.mxu0 0
  %273 = vmatprep.subr.bf16.mxu0 0
  %274 = vmatpush1.bf16.msra.mxu0 0
  %275 = vmatprep.subr.bf16.mxu0 0
  %276 = vmatpush1.bf16.msra.mxu0 0
  %277 = vmatprep.subr.bf16.mxu0 0
  %278 = vmatpush1.bf16.msra.mxu0 0
  %279 = vmatprep.subr.bf16.mxu0 0
  %280 = vmatpush1.bf16.msra.mxu0 0
  %281 = vmatprep.subr.bf16.mxu0 0
  %282 = vmatpush1.bf16.msra.mxu0 0
  %283 = vmatprep.subr.bf16.mxu0 0
  %284 = vmatpush1.bf16.msra.mxu0 0
  %285 = vmatprep.subr.bf16.mxu0 0
  %286 = vmatpush1.bf16.msra.mxu0 0
  %287 = vmatprep.subr.bf16.mxu0 0
  %288 = vmatpush1.bf16.msra.mxu0 0
  %289 = vmatprep.mubr.bf16.mxu0 0
  %290 = vmatmul.mubr.bf16.gmra.mrb[0].mxu0 %v194
  %v291 = vpop.f32.mrb[0].mxu0
  %v292 = vadd.f32 0.0, %v291
  %v293 = vpop.f32.mrb[0].mxu0
  %v294 = vadd.f32 0.0, %v293
  %v295 = vpop.f32.mrb[0].mxu0
  %v296 = vadd.f32 0.0, %v295
  %v297 = vpop.f32.mrb[0].mxu0
  %v298 = vadd.f32 0.0, %v297
  %299 = vmatprep.mubr.bf16.mxu0 0
  %300 = vmatmul.mubr.bf16.gmra.mrb[0].mxu0 %v197
  %v301 = vpop.f32.mrb[0].mxu0
  %v302 = vadd.f32 0.0, %v301
  %v303 = vpop.f32.mrb[0].mxu0
  %v304 = vadd.f32 0.0, %v303
  %v305 = vpop.f32.mrb[0].mxu0
  %v306 = vadd.f32 0.0, %v305
  %v307 = vpop.f32.mrb[0].mxu0
  %v308 = vadd.f32 0.0, %v307
  %309 = vmatprep.mubr.bf16.mxu0 0
  %310 = vmatmul.mubr.bf16.gmra.mrb[0].mxu0 %v200
  %v311 = vpop.f32.mrb[0].mxu0
  %v312 = vadd.f32 0.0, %v311
  %v313 = vpop.f32.mrb[0].mxu0
  %v314 = vadd.f32 0.0, %v313
  %v315 = vpop.f32.mrb[0].mxu0
  %v316 = vadd.f32 0.0, %v315
  %v317 = vpop.f32.mrb[0].mxu0
  %v318 = vadd.f32 0.0, %v317
  %319 = vmatprep.mubr.bf16.mxu0 0
  %320 = vmatmul.mubr.bf16.gmra.mrb[0].mxu0 %v203
  %v321 = vpop.f32.mrb[0].mxu0
  %v322 = vadd.f32 0.0, %v321
  %v323 = vpop.f32.mrb[0].mxu0
  %v324 = vadd.f32 0.0, %v323
  %v325 = vpop.f32.mrb[0].mxu0
  %v326 = vadd.f32 0.0, %v325
  %v327 = vpop.f32.mrb[0].mxu0
  %v328 = vadd.f32 0.0, %v327
  %329 = vdwg.mxu0
  %330 = vmatprep.subr.bf16.mxu0 %v147
  %331 = vmatpush1.bf16.msra.mxu0 %v146
  %332 = vmatprep.subr.bf16.mxu0 %v219
  %333 = vmatpush1.bf16.msra.mxu0 %v216
  %334 = vmatprep.subr.bf16.mxu0 0
  %335 = vmatpush1.bf16.msra.mxu0 0
  %336 = vmatprep.subr.bf16.mxu0 0
  %337 = vmatpush1.bf16.msra.mxu0 0
  %338 = vmatprep.subr.bf16.mxu0 0
  %339 = vmatpush1.bf16.msra.mxu0 0
  %340 = vmatprep.subr.bf16.mxu0 0
  %341 = vmatpush1.bf16.msra.mxu0 0
  %342 = vmatprep.subr.bf16.mxu0 0
  %343 = vmatpush1.bf16.msra.mxu0 0
  %344 = vmatprep.subr.bf16.mxu0 0
  %345 = vmatpush1.bf16.msra.mxu0 0
  %346 = vmatprep.subr.bf16.mxu0 0
  %347 = vmatpush1.bf16.msra.mxu0 0
  %348 = vmatprep.subr.bf16.mxu0 0
  %349 = vmatpush1.bf16.msra.mxu0 0
  %350 = vmatprep.subr.bf16.mxu0 0
  %351 = vmatpush1.bf16.msra.mxu0 0
  %352 = vmatprep.subr.bf16.mxu0 0
  %353 = vmatpush1.bf16.msra.mxu0 0
  %354 = vmatprep.subr.bf16.mxu0 0
  %355 = vmatpush1.bf16.msra.mxu0 0
  %356 = vmatprep.subr.bf16.mxu0 0
  %357 = vmatpush1.bf16.msra.mxu0 0
  %358 = vmatprep.subr.bf16.mxu0 0
  %359 = vmatpush1.bf16.msra.mxu0 0
  %360 = vmatprep.subr.bf16.mxu0 0
  %361 = vmatpush1.bf16.msra.mxu0 0
  %362 = vmatprep.mubr.bf16.mxu0 0
  %363 = vmatmul.mubr.bf16.gmra.mrb[0].mxu0 %v194
  %v364 = vpop.f32.mrb[0].mxu0
  %v365 = vadd.f32 0.0, %v364
  %v366 = vpop.f32.mrb[0].mxu0
  %v367 = vadd.f32 0.0, %v366
  %v368 = vpop.f32.mrb[0].mxu0
  %v369 = vadd.f32 0.0, %v368
  %v370 = vpop.f32.mrb[0].mxu0
  %v371 = vadd.f32 0.0, %v370
  %372 = vmatprep.mubr.bf16.mxu0 0
  %373 = vmatmul.mubr.bf16.gmra.mrb[0].mxu0 %v197
  %v374 = vpop.f32.mrb[0].mxu0
  %v375 = vadd.f32 0.0, %v374
  %v376 = vpop.f32.mrb[0].mxu0
  %v377 = vadd.f32 0.0, %v376
  %v378 = vpop.f32.mrb[0].mxu0
  %v379 = vadd.f32 0.0, %v378
  %v380 = vpop.f32.mrb[0].mxu0
  %v381 = vadd.f32 0.0, %v380
  %382 = vmatprep.mubr.bf16.mxu0 0
  %383 = vmatmul.mubr.bf16.gmra.mrb[0].mxu0 %v200
  %v384 = vpop.f32.mrb[0].mxu0
  %v385 = vadd.f32 0.0, %v384
  %v386 = vpop.f32.mrb[0].mxu0
  %v387 = vadd.f32 0.0, %v386
  %v388 = vpop.f32.mrb[0].mxu0
  %v389 = vadd.f32 0.0, %v388
  %v390 = vpop.f32.mrb[0].mxu0
  %v391 = vadd.f32 0.0, %v390
  %392 = vmatprep.mubr.bf16.mxu0 0
  %393 = vmatmul.mubr.bf16.gmra.mrb[0].mxu0 %v203
  %v394 = vpop.f32.mrb[0].mxu0
  %v395 = vadd.f32 0.0, %v394
  %v396 = vpop.f32.mrb[0].mxu0
  %v397 = vadd.f32 0.0, %v396
  %v398 = vpop.f32.mrb[0].mxu0
  %v399 = vadd.f32 0.0, %v398
  %v400 = vpop.f32.mrb[0].mxu0
  %v401 = vadd.f32 0.0, %v400
  %402 = vdwg.mxu0
  %403 = vmatprep.subr.bf16.mxu0 %v149
  %404 = vmatpush1.bf16.msra.mxu0 %v148
  %405 = vmatprep.subr.bf16.mxu0 %v225
  %406 = vmatpush1.bf16.msra.mxu0 %v222
  %407 = vmatprep.subr.bf16.mxu0 0
  %408 = vmatpush1.bf16.msra.mxu0 0
  %409 = vmatprep.subr.bf16.mxu0 0
  %410 = vmatpush1.bf16.msra.mxu0 0
  %411 = vmatprep.subr.bf16.mxu0 0
  %412 = vmatpush1.bf16.msra.mxu0 0
  %413 = vmatprep.subr.bf16.mxu0 0
  %414 = vmatpush1.bf16.msra.mxu0 0
  %415 = vmatprep.subr.bf16.mxu0 0
  %416 = vmatpush1.bf16.msra.mxu0 0
  %417 = vmatprep.subr.bf16.mxu0 0
  %418 = vmatpush1.bf16.msra.mxu0 0
  %419 = vmatprep.subr.bf16.mxu0 0
  %420 = vmatpush1.bf16.msra.mxu0 0
  %421 = vmatprep.subr.bf16.mxu0 0
  %422 = vmatpush1.bf16.msra.mxu0 0
  %423 = vmatprep.subr.bf16.mxu0 0
  %424 = vmatpush1.bf16.msra.mxu0 0
  %425 = vmatprep.subr.bf16.mxu0 0
  %426 = vmatpush1.bf16.msra.mxu0 0
  %427 = vmatprep.subr.bf16.mxu0 0
  %428 = vmatpush1.bf16.msra.mxu0 0
  %429 = vmatprep.subr.bf16.mxu0 0
  %430 = vmatpush1.bf16.msra.mxu0 0
  %431 = vmatprep.subr.bf16.mxu0 0
  %432 = vmatpush1.bf16.msra.mxu0 0
  %433 = vmatprep.subr.bf16.mxu0 0
  %434 = vmatpush1.bf16.msra.mxu0 0
  %435 = vmatprep.mubr.bf16.mxu0 0
  %436 = vmatmul.mubr.bf16.gmra.mrb[0].mxu0 %v194
  %v437 = vpop.f32.mrb[0].mxu0
  %v438 = vadd.f32 0.0, %v437
  %v439 = vpop.f32.mrb[0].mxu0
  %v440 = vadd.f32 0.0, %v439
  %v441 = vpop.f32.mrb[0].mxu0
  %v442 = vadd.f32 0.0, %v441
  %v443 = vpop.f32.mrb[0].mxu0
  %v444 = vadd.f32 0.0, %v443
  %445 = vmatprep.mubr.bf16.mxu0 0
  %446 = vmatmul.mubr.bf16.gmra.mrb[0].mxu0 %v197
  %v447 = vpop.f32.mrb[0].mxu0
  %v448 = vadd.f32 0.0, %v447
  %v449 = vpop.f32.mrb[0].mxu0
  %v450 = vadd.f32 0.0, %v449
  %v451 = vpop.f32.mrb[0].mxu0
  %v452 = vadd.f32 0.0, %v451
  %v453 = vpop.f32.mrb[0].mxu0
  %v454 = vadd.f32 0.0, %v453
  %455 = vmatprep.mubr.bf16.mxu0 0
  %456 = vmatmul.mubr.bf16.gmra.mrb[0].mxu0 %v200
  %v457 = vpop.f32.mrb[0].mxu0
  %v458 = vadd.f32 0.0, %v457
  %v459 = vpop.f32.mrb[0].mxu0
  %v460 = vadd.f32 0.0, %v459
  %v461 = vpop.f32.mrb[0].mxu0
  %v462 = vadd.f32 0.0, %v461
  %v463 = vpop.f32.mrb[0].mxu0
  %v464 = vadd.f32 0.0, %v463
  %465 = vmatprep.mubr.bf16.mxu0 0
  %466 = vmatmul.mubr.bf16.gmra.mrb[0].mxu0 %v203
  %v467 = vpop.f32.mrb[0].mxu0
  %v468 = vadd.f32 0.0, %v467
  %v469 = vpop.f32.mrb[0].mxu0
  %v470 = vadd.f32 0.0, %v469
  %v471 = vpop.f32.mrb[0].mxu0
  %v472 = vadd.f32 0.0, %v471
  %v473 = vpop.f32.mrb[0].mxu0
  %v474 = vadd.f32 0.0, %v473
  %475 = vdwg.mxu0
  %476 = vmatprep.subr.bf16.mxu0 %v151
  %477 = vmatpush1.bf16.msra.mxu0 %v150
  %478 = vmatprep.subr.bf16.mxu0 %v231
  %479 = vmatpush1.bf16.msra.mxu0 %v228
  %480 = vmatprep.subr.bf16.mxu0 0
  %481 = vmatpush1.bf16.msra.mxu0 0
  %482 = vmatprep.subr.bf16.mxu0 0
  %483 = vmatpush1.bf16.msra.mxu0 0
  %484 = vmatprep.subr.bf16.mxu0 0
  %485 = vmatpush1.bf16.msra.mxu0 0
  %486 = vmatprep.subr.bf16.mxu0 0
  %487 = vmatpush1.bf16.msra.mxu0 0
  %488 = vmatprep.subr.bf16.mxu0 0
  %489 = vmatpush1.bf16.msra.mxu0 0
  %490 = vmatprep.subr.bf16.mxu0 0
  %491 = vmatpush1.bf16.msra.mxu0 0
  %492 = vmatprep.subr.bf16.mxu0 0
  %493 = vmatpush1.bf16.msra.mxu0 0
  %494 = vmatprep.subr.bf16.mxu0 0
  %495 = vmatpush1.bf16.msra.mxu0 0
  %496 = vmatprep.subr.bf16.mxu0 0
  %497 = vmatpush1.bf16.msra.mxu0 0
  %498 = vmatprep.subr.bf16.mxu0 0
  %499 = vmatpush1.bf16.msra.mxu0 0
  %500 = vmatprep.subr.bf16.mxu0 0
  %501 = vmatpush1.bf16.msra.mxu0 0
  %502 = vmatprep.subr.bf16.mxu0 0
  %503 = vmatpush1.bf16.msra.mxu0 0
  %504 = vmatprep.subr.bf16.mxu0 0
  %505 = vmatpush1.bf16.msra.mxu0 0
  %506 = vmatprep.subr.bf16.mxu0 0
  %507 = vmatpush1.bf16.msra.mxu0 0
  %508 = vmatprep.mubr.bf16.mxu0 0
  %509 = vmatmul.mubr.bf16.gmra.mrb[0].mxu0 %v194
  %v510 = vpop.f32.mrb[0].mxu0
  %v511 = vadd.f32 0.0, %v510
  %v512 = vpop.f32.mrb[0].mxu0
  %v513 = vadd.f32 0.0, %v512
  %v514 = vpop.f32.mrb[0].mxu0
  %v515 = vadd.f32 0.0, %v514
  %v516 = vpop.f32.mrb[0].mxu0
  %v517 = vadd.f32 0.0, %v516
  %518 = vmatprep.mubr.bf16.mxu0 0
  %519 = vmatmul.mubr.bf16.gmra.mrb[0].mxu0 %v197
  %v520 = vpop.f32.mrb[0].mxu0
  %v521 = vadd.f32 0.0, %v520
  %v522 = vpop.f32.mrb[0].mxu0
  %v523 = vadd.f32 0.0, %v522
  %v524 = vpop.f32.mrb[0].mxu0
  %v525 = vadd.f32 0.0, %v524
  %v526 = vpop.f32.mrb[0].mxu0
  %v527 = vadd.f32 0.0, %v526
  %528 = vmatprep.mubr.bf16.mxu0 0
  %529 = vmatmul.mubr.bf16.gmra.mrb[0].mxu0 %v200
  %v530 = vpop.f32.mrb[0].mxu0
  %v531 = vadd.f32 0.0, %v530
  %v532 = vpop.f32.mrb[0].mxu0
  %v533 = vadd.f32 0.0, %v532
  %v534 = vpop.f32.mrb[0].mxu0
  %v535 = vadd.f32 0.0, %v534
  %v536 = vpop.f32.mrb[0].mxu0
  %v537 = vadd.f32 0.0, %v536
  %538 = vmatprep.mubr.bf16.mxu0 0
  %539 = vmatmul.mubr.bf16.gmra.mrb[0].mxu0 %v203
  %v540 = vpop.f32.mrb[0].mxu0
  %v541 = vadd.f32 0.0, %v540
  %v542 = vpop.f32.mrb[0].mxu0
  %v543 = vadd.f32 0.0, %v542
  %v544 = vpop.f32.mrb[0].mxu0
  %v545 = vadd.f32 0.0, %v544
  %v546 = vpop.f32.mrb[0].mxu0
  %v547 = vadd.f32 0.0, %v546
  %548 = vdwg.mxu0
  %549 = vmatprep.subr.bf16.mxu0 %v153
  %550 = vmatpush1.bf16.msra.mxu0 %v152
  %551 = vmatprep.subr.bf16.mxu0 %v237
  %552 = vmatpush1.bf16.msra.mxu0 %v234
  %553 = vmatprep.subr.bf16.mxu0 0
  %554 = vmatpush1.bf16.msra.mxu0 0
  %555 = vmatprep.subr.bf16.mxu0 0
  %556 = vmatpush1.bf16.msra.mxu0 0
  %557 = vmatprep.subr.bf16.mxu0 0
  %558 = vmatpush1.bf16.msra.mxu0 0
  %559 = vmatprep.subr.bf16.mxu0 0
  %560 = vmatpush1.bf16.msra.mxu0 0
  %561 = vmatprep.subr.bf16.mxu0 0
  %562 = vmatpush1.bf16.msra.mxu0 0
  %563 = vmatprep.subr.bf16.mxu0 0
  %564 = vmatpush1.bf16.msra.mxu0 0
  %565 = vmatprep.subr.bf16.mxu0 0
  %566 = vmatpush1.bf16.msra.mxu0 0
  %567 = vmatprep.subr.bf16.mxu0 0
  %568 = vmatpush1.bf16.msra.mxu0 0
  %569 = vmatprep.subr.bf16.mxu0 0
  %570 = vmatpush1.bf16.msra.mxu0 0
  %571 = vmatprep.subr.bf16.mxu0 0
  %572 = vmatpush1.bf16.msra.mxu0 0
  %573 = vmatprep.subr.bf16.mxu0 0
  %574 = vmatpush1.bf16.msra.mxu0 0
  %575 = vmatprep.subr.bf16.mxu0 0
  %576 = vmatpush1.bf16.msra.mxu0 0
  %577 = vmatprep.subr.bf16.mxu0 0
  %578 = vmatpush1.bf16.msra.mxu0 0
  %579 = vmatprep.subr.bf16.mxu0 0
  %580 = vmatpush1.bf16.msra.mxu0 0
  %581 = vmatprep.mubr.bf16.mxu0 0
  %582 = vmatmul.mubr.bf16.gmra.mrb[0].mxu0 %v194
  %v583 = vpop.f32.mrb[0].mxu0
  %v584 = vadd.f32 0.0, %v583
  %v585 = vpop.f32.mrb[0].mxu0
  %v586 = vadd.f32 0.0, %v585
  %v587 = vpop.f32.mrb[0].mxu0
  %v588 = vadd.f32 0.0, %v587
  %v589 = vpop.f32.mrb[0].mxu0
  %v590 = vadd.f32 0.0, %v589
  %591 = vmatprep.mubr.bf16.mxu0 0
  %592 = vmatmul.mubr.bf16.gmra.mrb[0].mxu0 %v197
  %v593 = vpop.f32.mrb[0].mxu0
  %v594 = vadd.f32 0.0, %v593
  %v595 = vpop.f32.mrb[0].mxu0
  %v596 = vadd.f32 0.0, %v595
  %v597 = vpop.f32.mrb[0].mxu0
  %v598 = vadd.f32 0.0, %v597
  %v599 = vpop.f32.mrb[0].mxu0
  %v600 = vadd.f32 0.0, %v599
  %601 = vmatprep.mubr.bf16.mxu0 0
  %602 = vmatmul.mubr.bf16.gmra.mrb[0].mxu0 %v200
  %v603 = vpop.f32.mrb[0].mxu0
  %v604 = vadd.f32 0.0, %v603
  %v605 = vpop.f32.mrb[0].mxu0
  %v606 = vadd.f32 0.0, %v605
  %v607 = vpop.f32.mrb[0].mxu0
  %v608 = vadd.f32 0.0, %v607
  %v609 = vpop.f32.mrb[0].mxu0
  %v610 = vadd.f32 0.0, %v609
  %611 = vmatprep.mubr.bf16.mxu0 0
  %612 = vmatmul.mubr.bf16.gmra.mrb[0].mxu0 %v203
  %v613 = vpop.f32.mrb[0].mxu0
  %v614 = vadd.f32 0.0, %v613
  %v615 = vpop.f32.mrb[0].mxu0
  %v616 = vadd.f32 0.0, %v615
  %v617 = vpop.f32.mrb[0].mxu0
  %v618 = vadd.f32 0.0, %v617
  %v619 = vpop.f32.mrb[0].mxu0
  %v620 = vadd.f32 0.0, %v619
  %621 = vdwg.mxu0
  %622 = vmatprep.subr.bf16.mxu0 %v155
  %623 = vmatpush1.bf16.msra.mxu0 %v154
  %624 = vmatprep.subr.bf16.mxu0 %v243
  %625 = vmatpush1.bf16.msra.mxu0 %v240
  %626 = vmatprep.subr.bf16.mxu0 0
  %627 = vmatpush1.bf16.msra.mxu0 0
  %628 = vmatprep.subr.bf16.mxu0 0
  %629 = vmatpush1.bf16.msra.mxu0 0
  %630 = vmatprep.subr.bf16.mxu0 0
  %631 = vmatpush1.bf16.msra.mxu0 0
  %632 = vmatprep.subr.bf16.mxu0 0
  %633 = vmatpush1.bf16.msra.mxu0 0
  %634 = vmatprep.subr.bf16.mxu0 0
  %635 = vmatpush1.bf16.msra.mxu0 0
  %636 = vmatprep.subr.bf16.mxu0 0
  %637 = vmatpush1.bf16.msra.mxu0 0
  %638 = vmatprep.subr.bf16.mxu0 0
  %639 = vmatpush1.bf16.msra.mxu0 0
  %640 = vmatprep.subr.bf16.mxu0 0
  %641 = vmatpush1.bf16.msra.mxu0 0
  %642 = vmatprep.subr.bf16.mxu0 0
  %643 = vmatpush1.bf16.msra.mxu0 0
  %644 = vmatprep.subr.bf16.mxu0 0
  %645 = vmatpush1.bf16.msra.mxu0 0
  %646 = vmatprep.subr.bf16.mxu0 0
  %647 = vmatpush1.bf16.msra.mxu0 0
  %648 = vmatprep.subr.bf16.mxu0 0
  %649 = vmatpush1.bf16.msra.mxu0 0
  %650 = vmatprep.subr.bf16.mxu0 0
  %651 = vmatpush1.bf16.msra.mxu0 0
  %652 = vmatprep.subr.bf16.mxu0 0
  %653 = vmatpush1.bf16.msra.mxu0 0
  %654 = vmatprep.mubr.bf16.mxu0 0
  %655 = vmatmul.mubr.bf16.gmra.mrb[0].mxu0 %v194
  %v656 = vpop.f32.mrb[0].mxu0
  %v657 = vadd.f32 0.0, %v656
  %v658 = vpop.f32.mrb[0].mxu0
  %v659 = vadd.f32 0.0, %v658
  %v660 = vpop.f32.mrb[0].mxu0
  %v661 = vadd.f32 0.0, %v660
  %v662 = vpop.f32.mrb[0].mxu0
  %v663 = vadd.f32 0.0, %v662
  %664 = vmatprep.mubr.bf16.mxu0 0
  %665 = vmatmul.mubr.bf16.gmra.mrb[0].mxu0 %v197
  %v666 = vpop.f32.mrb[0].mxu0
  %v667 = vadd.f32 0.0, %v666
  %v668 = vpop.f32.mrb[0].mxu0
  %v669 = vadd.f32 0.0, %v668
  %v670 = vpop.f32.mrb[0].mxu0
  %v671 = vadd.f32 0.0, %v670
  %v672 = vpop.f32.mrb[0].mxu0
  %v673 = vadd.f32 0.0, %v672
  %674 = vmatprep.mubr.bf16.mxu0 0
  %675 = vmatmul.mubr.bf16.gmra.mrb[0].mxu0 %v200
  %v676 = vpop.f32.mrb[0].mxu0
  %v677 = vadd.f32 0.0, %v676
  %v678 = vpop.f32.mrb[0].mxu0
  %v679 = vadd.f32 0.0, %v678
  %v680 = vpop.f32.mrb[0].mxu0
  %v681 = vadd.f32 0.0, %v680
  %v682 = vpop.f32.mrb[0].mxu0
  %v683 = vadd.f32 0.0, %v682
  %684 = vmatprep.mubr.bf16.mxu0 0
  %685 = vmatmul.mubr.bf16.gmra.mrb[0].mxu0 %v203
  %v686 = vpop.f32.mrb[0].mxu0
  %v687 = vadd.f32 0.0, %v686
  %v688 = vpop.f32.mrb[0].mxu0
  %v689 = vadd.f32 0.0, %v688
  %v690 = vpop.f32.mrb[0].mxu0
  %v691 = vadd.f32 0.0, %v690
  %v692 = vpop.f32.mrb[0].mxu0
  %v693 = vadd.f32 0.0, %v692
  %694 = vdwg.mxu0
  %695 = vmatprep.subr.bf16.mxu0 %v157
  %696 = vmatpush1.bf16.msra.mxu0 %v156
  %697 = vmatprep.subr.bf16.mxu0 %v249
  %698 = vmatpush1.bf16.msra.mxu0 %v246
  %699 = vmatprep.subr.bf16.mxu0 0
  %700 = vmatpush1.bf16.msra.mxu0 0
  %701 = vmatprep.subr.bf16.mxu0 0
  %702 = vmatpush1.bf16.msra.mxu0 0
  %703 = vmatprep.subr.bf16.mxu0 0
  %704 = vmatpush1.bf16.msra.mxu0 0
  %705 = vmatprep.subr.bf16.mxu0 0
  %706 = vmatpush1.bf16.msra.mxu0 0
  %707 = vmatprep.subr.bf16.mxu0 0
  %708 = vmatpush1.bf16.msra.mxu0 0
  %709 = vmatprep.subr.bf16.mxu0 0
  %710 = vmatpush1.bf16.msra.mxu0 0
  %711 = vmatprep.subr.bf16.mxu0 0
  %712 = vmatpush1.bf16.msra.mxu0 0
  %713 = vmatprep.subr.bf16.mxu0 0
  %714 = vmatpush1.bf16.msra.mxu0 0
  %715 = vmatprep.subr.bf16.mxu0 0
  %716 = vmatpush1.bf16.msra.mxu0 0
  %717 = vmatprep.subr.bf16.mxu0 0
  %718 = vmatpush1.bf16.msra.mxu0 0
  %719 = vmatprep.subr.bf16.mxu0 0
  %720 = vmatpush1.bf16.msra.mxu0 0
  %721 = vmatprep.subr.bf16.mxu0 0
  %722 = vmatpush1.bf16.msra.mxu0 0
  %723 = vmatprep.subr.bf16.mxu0 0
  %724 = vmatpush1.bf16.msra.mxu0 0
  %725 = vmatprep.subr.bf16.mxu0 0
  %726 = vmatpush1.bf16.msra.mxu0 0
  %727 = vmatprep.mubr.bf16.mxu0 0
  %728 = vmatmul.mubr.bf16.gmra.mrb[0].mxu0 %v194
  %v729 = vpop.f32.mrb[0].mxu0
  %v730 = vadd.f32 0.0, %v729
  %v731 = vpop.f32.mrb[0].mxu0
  %v732 = vadd.f32 0.0, %v731
  %v733 = vpop.f32.mrb[0].mxu0
  %v734 = vadd.f32 0.0, %v733
  %v735 = vpop.f32.mrb[0].mxu0
  %v736 = vadd.f32 0.0, %v735
  %737 = vmatprep.mubr.bf16.mxu0 0
  %738 = vmatmul.mubr.bf16.gmra.mrb[0].mxu0 %v197
  %v739 = vpop.f32.mrb[0].mxu0
  %v740 = vadd.f32 0.0, %v739
  %v741 = vpop.f32.mrb[0].mxu0
  %v742 = vadd.f32 0.0, %v741
  %v743 = vpop.f32.mrb[0].mxu0
  %v744 = vadd.f32 0.0, %v743
  %v745 = vpop.f32.mrb[0].mxu0
  %v746 = vadd.f32 0.0, %v745
  %747 = vmatprep.mubr.bf16.mxu0 0
  %748 = vmatmul.mubr.bf16.gmra.mrb[0].mxu0 %v200
  %v749 = vpop.f32.mrb[0].mxu0
  %v750 = vadd.f32 0.0, %v749
  %v751 = vpop.f32.mrb[0].mxu0
  %v752 = vadd.f32 0.0, %v751
  %v753 = vpop.f32.mrb[0].mxu0
  %v754 = vadd.f32 0.0, %v753
  %v755 = vpop.f32.mrb[0].mxu0
  %v756 = vadd.f32 0.0, %v755
  %757 = vmatprep.mubr.bf16.mxu0 0
  %758 = vmatmul.mubr.bf16.gmra.mrb[0].mxu0 %v203
  %v759 = vpop.f32.mrb[0].mxu0
  %v760 = vadd.f32 0.0, %v759
  %v761 = vpop.f32.mrb[0].mxu0
  %v762 = vadd.f32 0.0, %v761
  %v763 = vpop.f32.mrb[0].mxu0
  %v764 = vadd.f32 0.0, %v763
  %v765 = vpop.f32.mrb[0].mxu0
  %v766 = vadd.f32 0.0, %v765
  %767 = vdwg.mxu0
  %768 = vmatprep.subr.bf16.mxu0 %v159
  %769 = vmatpush1.bf16.msra.mxu0 %v158
  %770 = vmatprep.subr.bf16.mxu0 %v255
  %771 = vmatpush1.bf16.msra.mxu0 %v252
  %772 = vmatprep.subr.bf16.mxu0 0
  %773 = vmatpush1.bf16.msra.mxu0 0
  %774 = vmatprep.subr.bf16.mxu0 0
  %775 = vmatpush1.bf16.msra.mxu0 0
  %776 = vmatprep.subr.bf16.mxu0 0
  %777 = vmatpush1.bf16.msra.mxu0 0
  %778 = vmatprep.subr.bf16.mxu0 0
  %779 = vmatpush1.bf16.msra.mxu0 0
  %780 = vmatprep.subr.bf16.mxu0 0
  %781 = vmatpush1.bf16.msra.mxu0 0
  %782 = vmatprep.subr.bf16.mxu0 0
  %783 = vmatpush1.bf16.msra.mxu0 0
  %784 = vmatprep.subr.bf16.mxu0 0
  %785 = vmatpush1.bf16.msra.mxu0 0
  %786 = vmatprep.subr.bf16.mxu0 0
  %787 = vmatpush1.bf16.msra.mxu0 0
  %788 = vmatprep.subr.bf16.mxu0 0
  %789 = vmatpush1.bf16.msra.mxu0 0
  %790 = vmatprep.subr.bf16.mxu0 0
  %791 = vmatpush1.bf16.msra.mxu0 0
  %792 = vmatprep.subr.bf16.mxu0 0
  %793 = vmatpush1.bf16.msra.mxu0 0
  %794 = vmatprep.subr.bf16.mxu0 0
  %795 = vmatpush1.bf16.msra.mxu0 0
  %796 = vmatprep.subr.bf16.mxu0 0
  %797 = vmatpush1.bf16.msra.mxu0 0
  %798 = vmatprep.subr.bf16.mxu0 0
  %799 = vmatpush1.bf16.msra.mxu0 0
  %800 = vmatprep.mubr.bf16.mxu0 0
  %801 = vmatmul.mubr.bf16.gmra.mrb[0].mxu0 %v194
  %v802 = vpop.f32.mrb[0].mxu0
  %v803 = vadd.f32 0.0, %v802
  %v804 = vpop.f32.mrb[0].mxu0
  %v805 = vadd.f32 0.0, %v804
  %v806 = vpop.f32.mrb[0].mxu0
  %v807 = vadd.f32 0.0, %v806
  %v808 = vpop.f32.mrb[0].mxu0
  %v809 = vadd.f32 0.0, %v808
  %810 = vmatprep.mubr.bf16.mxu0 0
  %811 = vmatmul.mubr.bf16.gmra.mrb[0].mxu0 %v197
  %v812 = vpop.f32.mrb[0].mxu0
  %v813 = vadd.f32 0.0, %v812
  %v814 = vpop.f32.mrb[0].mxu0
  %v815 = vadd.f32 0.0, %v814
  %v816 = vpop.f32.mrb[0].mxu0
  %v817 = vadd.f32 0.0, %v816
  %v818 = vpop.f32.mrb[0].mxu0
  %v819 = vadd.f32 0.0, %v818
  %820 = vmatprep.mubr.bf16.mxu0 0
  %821 = vmatmul.mubr.bf16.gmra.mrb[0].mxu0 %v200
  %v822 = vpop.f32.mrb[0].mxu0
  %v823 = vadd.f32 0.0, %v822
  %v824 = vpop.f32.mrb[0].mxu0
  %v825 = vadd.f32 0.0, %v824
  %v826 = vpop.f32.mrb[0].mxu0
  %v827 = vadd.f32 0.0, %v826
  %v828 = vpop.f32.mrb[0].mxu0
  %v829 = vadd.f32 0.0, %v828
  %830 = vmatprep.mubr.bf16.mxu0 0
  %831 = vmatmul.mubr.bf16.gmra.mrb[0].mxu0 %v203
  %v832 = vpop.f32.mrb[0].mxu0
  %v833 = vadd.f32 0.0, %v832
  %v834 = vpop.f32.mrb[0].mxu0
  %v835 = vadd.f32 0.0, %v834
  %v836 = vpop.f32.mrb[0].mxu0
  %v837 = vadd.f32 0.0, %v836
  %v838 = vpop.f32.mrb[0].mxu0
  %v839 = vadd.f32 0.0, %v838
  %840 = vdwg.mxu0
  %v841 = vmax.f32 %v292, 0.0
  %v842 = vmax.f32 %v294, 0.0
  %v843 = vmax.f32 %v365, 0.0
  %v844 = vmax.f32 %v367, 0.0
  %v845 = vmax.f32 %v438, 0.0
  %v846 = vmax.f32 %v440, 0.0
  %v847 = vmax.f32 %v511, 0.0
  %v848 = vmax.f32 %v513, 0.0
  %v849 = vmax.f32 %v584, 0.0
  %v850 = vmax.f32 %v586, 0.0
  %v851 = vmax.f32 %v657, 0.0
  %v852 = vmax.f32 %v659, 0.0
  %v853 = vmax.f32 %v730, 0.0
  %v854 = vmax.f32 %v732, 0.0
  %v855 = vmax.f32 %v803, 0.0
  %v856 = vmax.f32 %v805, 0.0
  %v857 = vmax.f32 %v296, 0.0
  %v858 = vmax.f32 %v298, 0.0
  %v859 = vmax.f32 %v369, 0.0
  %v860 = vmax.f32 %v371, 0.0
  %v861 = vmax.f32 %v442, 0.0
  %v862 = vmax.f32 %v444, 0.0
  %v863 = vmax.f32 %v515, 0.0
  %v864 = vmax.f32 %v517, 0.0
  %v865 = vmax.f32 %v588, 0.0
  %v866 = vmax.f32 %v590, 0.0
  %v867 = vmax.f32 %v661, 0.0
  %v868 = vmax.f32 %v663, 0.0
  %v869 = vmax.f32 %v734, 0.0
  %v870 = vmax.f32 %v736, 0.0
  %v871 = vmax.f32 %v807, 0.0
  %v872 = vmax.f32 %v809, 0.0
  %v873 = vmax.f32 %v302, 0.0
  %v874 = vmax.f32 %v304, 0.0
  %v875 = vmax.f32 %v375, 0.0
  %v876 = vmax.f32 %v377, 0.0
  %v877 = vmax.f32 %v448, 0.0
  %v878 = vmax.f32 %v450, 0.0
  %v879 = vmax.f32 %v521, 0.0
  %v880 = vmax.f32 %v523, 0.0
  %v881 = vmax.f32 %v594, 0.0
  %v882 = vmax.f32 %v596, 0.0
  %v883 = vmax.f32 %v667, 0.0
  %v884 = vmax.f32 %v669, 0.0
  %v885 = vmax.f32 %v740, 0.0
  %v886 = vmax.f32 %v742, 0.0
  %v887 = vmax.f32 %v813, 0.0
  %v888 = vmax.f32 %v815, 0.0
  %v889 = vmax.f32 %v306, 0.0
  %v890 = vmax.f32 %v308, 0.0
  %v891 = vmax.f32 %v379, 0.0
  %v892 = vmax.f32 %v381, 0.0
  %v893 = vmax.f32 %v452, 0.0
  %v894 = vmax.f32 %v454, 0.0
  %v895 = vmax.f32 %v525, 0.0
  %v896 = vmax.f32 %v527, 0.0
  %v897 = vmax.f32 %v598, 0.0
  %v898 = vmax.f32 %v600, 0.0
  %v899 = vmax.f32 %v671, 0.0
  %v900 = vmax.f32 %v673, 0.0
  %v901 = vmax.f32 %v744, 0.0
  %v902 = vmax.f32 %v746, 0.0
  %v903 = vmax.f32 %v817, 0.0
  %v904 = vmax.f32 %v819, 0.0
  %v905 = vmax.f32 %v312, 0.0
  %v906 = vmax.f32 %v314, 0.0
  %v907 = vmax.f32 %v385, 0.0
  %v908 = vmax.f32 %v387, 0.0
  %v909 = vmax.f32 %v458, 0.0
  %v910 = vmax.f32 %v460, 0.0
  %v911 = vmax.f32 %v531, 0.0
  %v912 = vmax.f32 %v533, 0.0
  %v913 = vmax.f32 %v604, 0.0
  %v914 = vmax.f32 %v606, 0.0
  %v915 = vmax.f32 %v677, 0.0
  %v916 = vmax.f32 %v679, 0.0
  %v917 = vmax.f32 %v750, 0.0
  %v918 = vmax.f32 %v752, 0.0
  %v919 = vmax.f32 %v823, 0.0
  %v920 = vmax.f32 %v825, 0.0
  %v921 = vmax.f32 %v316, 0.0
  %v922 = vmax.f32 %v318, 0.0
  %v923 = vmax.f32 %v389, 0.0
  %v924 = vmax.f32 %v391, 0.0
  %v925 = vmax.f32 %v462, 0.0
  %v926 = vmax.f32 %v464, 0.0
  %v927 = vmax.f32 %v535, 0.0
  %v928 = vmax.f32 %v537, 0.0
  %v929 = vmax.f32 %v608, 0.0
  %v930 = vmax.f32 %v610, 0.0
  %v931 = vmax.f32 %v681, 0.0
  %v932 = vmax.f32 %v683, 0.0
  %v933 = vmax.f32 %v754, 0.0
  %v934 = vmax.f32 %v756, 0.0
  %v935 = vmax.f32 %v827, 0.0
  %v936 = vmax.f32 %v829, 0.0
  %v937 = vmax.f32 %v322, 0.0
  %v938 = vmax.f32 %v324, 0.0
  %v939 = vmax.f32 %v395, 0.0
  %v940 = vmax.f32 %v397, 0.0
  %v941 = vmax.f32 %v468, 0.0
  %v942 = vmax.f32 %v470, 0.0
  %v943 = vmax.f32 %v541, 0.0
  %v944 = vmax.f32 %v543, 0.0
  %v945 = vmax.f32 %v614, 0.0
  %v946 = vmax.f32 %v616, 0.0
  %v947 = vmax.f32 %v687, 0.0
  %v948 = vmax.f32 %v689, 0.0
  %v949 = vmax.f32 %v760, 0.0
  %v950 = vmax.f32 %v762, 0.0
  %v951 = vmax.f32 %v833, 0.0
  %v952 = vmax.f32 %v835, 0.0
  %v953 = vmax.f32 %v326, 0.0
  %v954 = vmax.f32 %v328, 0.0
  %v955 = vmax.f32 %v399, 0.0
  %v956 = vmax.f32 %v401, 0.0
  %v957 = vmax.f32 %v472, 0.0
  %v958 = vmax.f32 %v474, 0.0
  %v959 = vmax.f32 %v545, 0.0
  %v960 = vmax.f32 %v547, 0.0
  %v961 = vmax.f32 %v618, 0.0
  %v962 = vmax.f32 %v620, 0.0
  %v963 = vmax.f32 %v691, 0.0
  %v964 = vmax.f32 %v693, 0.0
  %v965 = vmax.f32 %v764, 0.0
  %v966 = vmax.f32 %v766, 0.0
  %v967 = vmax.f32 %v837, 0.0
  %v968 = vmax.f32 %v839, 0.0
  %969 = vst [vmem:[#allocation2] sm:$0xff] %v841
  %970 = vst [vmem:[#allocation2 + $0x8] sm:$0xff] %v842
  %971 = vst [vmem:[#allocation2 + $0x10] sm:$0xff] %v843
  %972 = vst [vmem:[#allocation2 + $0x18] sm:$0xff] %v844
  %973 = vst [vmem:[#allocation2 + $0x20] sm:$0xff] %v845
  %974 = vst [vmem:[#allocation2 + $0x28] sm:$0xff] %v846
  %975 = vst [vmem:[#allocation2 + $0x30] sm:$0xff] %v847
  %976 = vst [vmem:[#allocation2 + $0x38] sm:$0xff] %v848
  %977 = vst [vmem:[#allocation2 + $0x40] sm:$0xff] %v849
  %978 = vst [vmem:[#allocation2 + $0x48] sm:$0xff] %v850
  %979 = vst [vmem:[#allocation2 + $0x50] sm:$0xff] %v851
  %980 = vst [vmem:[#allocation2 + $0x58] sm:$0xff] %v852
  %981 = vst [vmem:[#allocation2 + $0x60] sm:$0xff] %v853
  %982 = vst [vmem:[#allocation2 + $0x68] sm:$0xff] %v854
  %983 = vst [vmem:[#allocation2 + $0x70] sm:$0xff] %v855
  %984 = vst [vmem:[#allocation2 + $0x78] sm:$0xff] %v856
  %985 = vst [vmem:[#allocation2 + $0x80] sm:$0xff] %v857
  %986 = vst [vmem:[#allocation2 + $0x88] sm:$0xff] %v858
  %987 = vst [vmem:[#allocation2 + $0x90] sm:$0xff] %v859
  %988 = vst [vmem:[#allocation2 + $0x98] sm:$0xff] %v860
  %989 = vst [vmem:[#allocation2 + $0xa0] sm:$0xff] %v861
  %990 = vst [vmem:[#allocation2 + $0xa8] sm:$0xff] %v862
  %991 = vst [vmem:[#allocation2 + $0xb0] sm:$0xff] %v863
  %992 = vst [vmem:[#allocation2 + $0xb8] sm:$0xff] %v864
  %993 = vst [vmem:[#allocation2 + $0xc0] sm:$0xff] %v865
  %994 = vst [vmem:[#allocation2 + $0xc8] sm:$0xff] %v866
  %995 = vst [vmem:[#allocation2 + $0xd0] sm:$0xff] %v867
  %996 = vst [vmem:[#allocation2 + $0xd8] sm:$0xff] %v868
  %997 = vst [vmem:[#allocation2 + $0xe0] sm:$0xff] %v869
  %998 = vst [vmem:[#allocation2 + $0xe8] sm:$0xff] %v870
  %999 = vst [vmem:[#allocation2 + $0xf0] sm:$0xff] %v871
  %1000 = vst [vmem:[#allocation2 + $0xf8] sm:$0xff] %v872
  %1001 = vst [vmem:[#allocation2 + $0x100] sm:$0xff] %v873
  %1002 = vst [vmem:[#allocation2 + $0x108] sm:$0xff] %v874
  %1003 = vst [vmem:[#allocation2 + $0x110] sm:$0xff] %v875
  %1004 = vst [vmem:[#allocation2 + $0x118] sm:$0xff] %v876
  %1005 = vst [vmem:[#allocation2 + $0x120] sm:$0xff] %v877
  %1006 = vst [vmem:[#allocation2 + $0x128] sm:$0xff] %v878
  %1007 = vst [vmem:[#allocation2 + $0x130] sm:$0xff] %v879
  %1008 = vst [vmem:[#allocation2 + $0x138] sm:$0xff] %v880
  %1009 = vst [vmem:[#allocation2 + $0x140] sm:$0xff] %v881
  %1010 = vst [vmem:[#allocation2 + $0x148] sm:$0xff] %v882
  %1011 = vst [vmem:[#allocation2 + $0x150] sm:$0xff] %v883
  %1012 = vst [vmem:[#allocation2 + $0x158] sm:$0xff] %v884
  %1013 = vst [vmem:[#allocation2 + $0x160] sm:$0xff] %v885
  %1014 = vst [vmem:[#allocation2 + $0x168] sm:$0xff] %v886
  %1015 = vst [vmem:[#allocation2 + $0x170] sm:$0xff] %v887
  %1016 = vst [vmem:[#allocation2 + $0x178] sm:$0xff] %v888
  %1017 = vst [vmem:[#allocation2 + $0x180] sm:$0xff] %v889
  %1018 = vst [vmem:[#allocation2 + $0x188] sm:$0xff] %v890
  %1019 = vst [vmem:[#allocation2 + $0x190] sm:$0xff] %v891
  %1020 = vst [vmem:[#allocation2 + $0x198] sm:$0xff] %v892
  %1021 = vst [vmem:[#allocation2 + $0x1a0] sm:$0xff] %v893
  %1022 = vst [vmem:[#allocation2 + $0x1a8] sm:$0xff] %v894
  %1023 = vst [vmem:[#allocation2 + $0x1b0] sm:$0xff] %v895
  %1024 = vst [vmem:[#allocation2 + $0x1b8] sm:$0xff] %v896
  %1025 = vst [vmem:[#allocation2 + $0x1c0] sm:$0xff] %v897
  %1026 = vst [vmem:[#allocation2 + $0x1c8] sm:$0xff] %v898
  %1027 = vst [vmem:[#allocation2 + $0x1d0] sm:$0xff] %v899
  %1028 = vst [vmem:[#allocation2 + $0x1d8] sm:$0xff] %v900
  %1029 = vst [vmem:[#allocation2 + $0x1e0] sm:$0xff] %v901
  %1030 = vst [vmem:[#allocation2 + $0x1e8] sm:$0xff] %v902
  %1031 = vst [vmem:[#allocation2 + $0x1f0] sm:$0xff] %v903
  %1032 = vst [vmem:[#allocation2 + $0x1f8] sm:$0xff] %v904
  %1033 = vst [vmem:[#allocation2 + $0x200] sm:$0xff] %v905
  %1034 = vst [vmem:[#allocation2 + $0x208] sm:$0xff] %v906
  %1035 = vst [vmem:[#allocation2 + $0x210] sm:$0xff] %v907
  %1036 = vst [vmem:[#allocation2 + $0x218] sm:$0xff] %v908
  %1037 = vst [vmem:[#allocation2 + $0x220] sm:$0xff] %v909
  %1038 = vst [vmem:[#allocation2 + $0x228] sm:$0xff] %v910
  %1039 = vst [vmem:[#allocation2 + $0x230] sm:$0xff] %v911
  %1040 = vst [vmem:[#allocation2 + $0x238] sm:$0xff] %v912
  %1041 = vst [vmem:[#allocation2 + $0x240] sm:$0xff] %v913
  %1042 = vst [vmem:[#allocation2 + $0x248] sm:$0xff] %v914
  %1043 = vst [vmem:[#allocation2 + $0x250] sm:$0xff] %v915
  %1044 = vst [vmem:[#allocation2 + $0x258] sm:$0xff] %v916
  %1045 = vst [vmem:[#allocation2 + $0x260] sm:$0xff] %v917
  %1046 = vst [vmem:[#allocation2 + $0x268] sm:$0xff] %v918
  %1047 = vst [vmem:[#allocation2 + $0x270] sm:$0xff] %v919
  %1048 = vst [vmem:[#allocation2 + $0x278] sm:$0xff] %v920
  %1049 = vst [vmem:[#allocation2 + $0x280] sm:$0xff] %v921
  %1050 = vst [vmem:[#allocation2 + $0x288] sm:$0xff] %v922
  %1051 = vst [vmem:[#allocation2 + $0x290] sm:$0xff] %v923
  %1052 = vst [vmem:[#allocation2 + $0x298] sm:$0xff] %v924
  %1053 = vst [vmem:[#allocation2 + $0x2a0] sm:$0xff] %v925
  %1054 = vst [vmem:[#allocation2 + $0x2a8] sm:$0xff] %v926
  %1055 = vst [vmem:[#allocation2 + $0x2b0] sm:$0xff] %v927
  %1056 = vst [vmem:[#allocation2 + $0x2b8] sm:$0xff] %v928
  %1057 = vst [vmem:[#allocation2 + $0x2c0] sm:$0xff] %v929
  %1058 = vst [vmem:[#allocation2 + $0x2c8] sm:$0xff] %v930
  %1059 = vst [vmem:[#allocation2 + $0x2d0] sm:$0xff] %v931
  %1060 = vst [vmem:[#allocation2 + $0x2d8] sm:$0xff] %v932
  %1061 = vst [vmem:[#allocation2 + $0x2e0] sm:$0xff] %v933
  %1062 = vst [vmem:[#allocation2 + $0x2e8] sm:$0xff] %v934
  %1063 = vst [vmem:[#allocation2 + $0x2f0] sm:$0xff] %v935
  %1064 = vst [vmem:[#allocation2 + $0x2f8] sm:$0xff] %v936
  %1065 = vst [vmem:[#allocation2 + $0x300] sm:$0xff] %v937
  %1066 = vst [vmem:[#allocation2 + $0x308] sm:$0xff] %v938
  %1067 = vst [vmem:[#allocation2 + $0x310] sm:$0xff] %v939
  %1068 = vst [vmem:[#allocation2 + $0x318] sm:$0xff] %v940
  %1069 = vst [vmem:[#allocation2 + $0x320] sm:$0xff] %v941
  %1070 = vst [vmem:[#allocation2 + $0x328] sm:$0xff] %v942
  %1071 = vst [vmem:[#allocation2 + $0x330] sm:$0xff] %v943
  %1072 = vst [vmem:[#allocation2 + $0x338] sm:$0xff] %v944
  %1073 = vst [vmem:[#allocation2 + $0x340] sm:$0xff] %v945
  %1074 = vst [vmem:[#allocation2 + $0x348] sm:$0xff] %v946
  %1075 = vst [vmem:[#allocation2 + $0x350] sm:$0xff] %v947
  %1076 = vst [vmem:[#allocation2 + $0x358] sm:$0xff] %v948
  %1077 = vst [vmem:[#allocation2 + $0x360] sm:$0xff] %v949
  %1078 = vst [vmem:[#allocation2 + $0x368] sm:$0xff] %v950
  %1079 = vst [vmem:[#allocation2 + $0x370] sm:$0xff] %v951
  %1080 = vst [vmem:[#allocation2 + $0x378] sm:$0xff] %v952
  %1081 = vst [vmem:[#allocation2 + $0x380] sm:$0xff] %v953
  %1082 = vst [vmem:[#allocation2 + $0x388] sm:$0xff] %v954
  %1083 = vst [vmem:[#allocation2 + $0x390] sm:$0xff] %v955
  %1084 = vst [vmem:[#allocation2 + $0x398] sm:$0xff] %v956
  %1085 = vst [vmem:[#allocation2 + $0x3a0] sm:$0xff] %v957
  %1086 = vst [vmem:[#allocation2 + $0x3a8] sm:$0xff] %v958
  %1087 = vst [vmem:[#allocation2 + $0x3b0] sm:$0xff] %v959
  %1088 = vst [vmem:[#allocation2 + $0x3b8] sm:$0xff] %v960
  %1089 = vst [vmem:[#allocation2 + $0x3c0] sm:$0xff] %v961
  %1090 = vst [vmem:[#allocation2 + $0x3c8] sm:$0xff] %v962
  %1091 = vst [vmem:[#allocation2 + $0x3d0] sm:$0xff] %v963
  %1092 = vst [vmem:[#allocation2 + $0x3d8] sm:$0xff] %v964
  %1093 = vst [vmem:[#allocation2 + $0x3e0] sm:$0xff] %v965
  %1094 = vst [vmem:[#allocation2 + $0x3e8] sm:$0xff] %v966
  %1095 = vst [vmem:[#allocation2 + $0x3f0] sm:$0xff] %v967
  %1096 = vst [vmem:[#allocation2 + $0x3f8] sm:$0xff] %v968
  loop: start=0, step=1, limit=2
  $region18: #{daf_forward.1} parent=0 // loop_pre_header
    _
  $region19: #{daf_forward.1} parent=0 // loop_header
    %s1098 = sphi 0, %s1102
    %p1099 = scmp.ge.s32.totalorder %s1098, 2
  $region20: #{daf_forward.1} parent=0 // loop_header_branch
    %1101 = sbr.rel (%p1099) target = $region24
  $region21: #{daf_forward.1} parent=0 // loop_body
    %s1103 = smul.u32 %s1098, 1024
    %s1104 = sshra.s32 %s1103, 7
    %s1105 = sand.u32 %s1103, 127
    %s1106 = smul.addr %s1104, 8
    %s1107 = scalar_lea.vmem [#allocation2], %s1106
    %v1108 = vld [vmem:[%s1107] sm:$0xff]
    %v1109 = vld [vmem:[%s1107 + $0x8] sm:$0xff]
    %v1110 = vld [vmem:[%s1107 + $0x10] sm:$0xff]
    %v1111 = vld [vmem:[%s1107 + $0x18] sm:$0xff]
    %v1112 = vld [vmem:[%s1107 + $0x20] sm:$0xff]
    %v1113 = vld [vmem:[%s1107 + $0x28] sm:$0xff]
    %v1114 = vld [vmem:[%s1107 + $0x30] sm:$0xff]
    %v1115 = vld [vmem:[%s1107 + $0x38] sm:$0xff]
    %v1116 = vld [vmem:[%s1107 + $0x80] sm:$0xff]
    %v1117 = vld [vmem:[%s1107 + $0x88] sm:$0xff]
    %v1118 = vld [vmem:[%s1107 + $0x90] sm:$0xff]
    %v1119 = vld [vmem:[%s1107 + $0x98] sm:$0xff]
    %v1120 = vld [vmem:[%s1107 + $0xa0] sm:$0xff]
    %v1121 = vld [vmem:[%s1107 + $0xa8] sm:$0xff]
    %v1122 = vld [vmem:[%s1107 + $0xb0] sm:$0xff]
    %v1123 = vld [vmem:[%s1107 + $0xb8] sm:$0xff]
    %v1124 = vld [vmem:[%s1107 + $0x100] sm:$0xff]
    %v1125 = vld [vmem:[%s1107 + $0x108] sm:$0xff]
    %v1126 = vld [vmem:[%s1107 + $0x110] sm:$0xff]
    %v1127 = vld [vmem:[%s1107 + $0x118] sm:$0xff]
    %v1128 = vld [vmem:[%s1107 + $0x120] sm:$0xff]
    %v1129 = vld [vmem:[%s1107 + $0x128] sm:$0xff]
    %v1130 = vld [vmem:[%s1107 + $0x130] sm:$0xff]
    %v1131 = vld [vmem:[%s1107 + $0x138] sm:$0xff]
    %v1132 = vld [vmem:[%s1107 + $0x180] sm:$0xff]
    %v1133 = vld [vmem:[%s1107 + $0x188] sm:$0xff]
    %v1134 = vld [vmem:[%s1107 + $0x190] sm:$0xff]
    %v1135 = vld [vmem:[%s1107 + $0x198] sm:$0xff]
    %v1136 = vld [vmem:[%s1107 + $0x1a0] sm:$0xff]
    %v1137 = vld [vmem:[%s1107 + $0x1a8] sm:$0xff]
    %v1138 = vld [vmem:[%s1107 + $0x1b0] sm:$0xff]
    %v1139 = vld [vmem:[%s1107 + $0x1b8] sm:$0xff]
    %v1140 = vpack.c.bf16 %v1116, %v1108
    %v1141 = vpack.c.bf16 %v1117, %v1109
    %v1142 = vpack.c.bf16 %v1118, %v1110
    %v1143 = vpack.c.bf16 %v1119, %v1111
    %v1144 = vpack.c.bf16 %v1120, %v1112
    %v1145 = vpack.c.bf16 %v1121, %v1113
    %v1146 = vpack.c.bf16 %v1122, %v1114
    %v1147 = vpack.c.bf16 %v1123, %v1115
    %v1148 = vpack.c.bf16 %v1132, %v1124
    %v1149 = vpack.c.bf16 %v1133, %v1125
    %v1150 = vpack.c.bf16 %v1134, %v1126
    %v1151 = vpack.c.bf16 %v1135, %v1127
    %v1152 = vpack.c.bf16 %v1136, %v1128
    %v1153 = vpack.c.bf16 %v1137, %v1129
    %v1154 = vpack.c.bf16 %v1138, %v1130
    %v1155 = vpack.c.bf16 %v1139, %v1131
    %v1156 = vld [vmem:[%s1107 + $0x200] sm:$0xff]
    %v1157 = vld [vmem:[%s1107 + $0x208] sm:$0xff]
    %v1158 = vld [vmem:[%s1107 + $0x210] sm:$0xff]
    %v1159 = vld [vmem:[%s1107 + $0x218] sm:$0xff]
    %v1160 = vld [vmem:[%s1107 + $0x220] sm:$0xff]
    %v1161 = vld [vmem:[%s1107 + $0x228] sm:$0xff]
    %v1162 = vld [vmem:[%s1107 + $0x230] sm:$0xff]
    %v1163 = vld [vmem:[%s1107 + $0x238] sm:$0xff]
    %v1164 = vld [vmem:[%s1107 + $0x280] sm:$0xff]
    %v1165 = vld [vmem:[%s1107 + $0x288] sm:$0xff]
    %v1166 = vld [vmem:[%s1107 + $0x290] sm:$0xff]
    %v1167 = vld [vmem:[%s1107 + $0x298] sm:$0xff]
    %v1168 = vld [vmem:[%s1107 + $0x2a0] sm:$0xff]
    %v1169 = vld [vmem:[%s1107 + $0x2a8] sm:$0xff]
    %v1170 = vld [vmem:[%s1107 + $0x2b0] sm:$0xff]
    %v1171 = vld [vmem:[%s1107 + $0x2b8] sm:$0xff]
    %v1172 = vld [vmem:[%s1107 + $0x300] sm:$0xff]
    %v1173 = vld [vmem:[%s1107 + $0x308] sm:$0xff]
    %v1174 = vld [vmem:[%s1107 + $0x310] sm:$0xff]
    %v1175 = vld [vmem:[%s1107 + $0x318] sm:$0xff]
    %v1176 = vld [vmem:[%s1107 + $0x320] sm:$0xff]
    %v1177 = vld [vmem:[%s1107 + $0x328] sm:$0xff]
    %v1178 = vld [vmem:[%s1107 + $0x330] sm:$0xff]
    %v1179 = vld [vmem:[%s1107 + $0x338] sm:$0xff]
    %v1180 = vld [vmem:[%s1107 + $0x380] sm:$0xff]
    %v1181 = vld [vmem:[%s1107 + $0x388] sm:$0xff]
    %v1182 = vld [vmem:[%s1107 + $0x390] sm:$0xff]
    %v1183 = vld [vmem:[%s1107 + $0x398] sm:$0xff]
    %v1184 = vld [vmem:[%s1107 + $0x3a0] sm:$0xff]
    %v1185 = vld [vmem:[%s1107 + $0x3a8] sm:$0xff]
    %v1186 = vld [vmem:[%s1107 + $0x3b0] sm:$0xff]
    %v1187 = vld [vmem:[%s1107 + $0x3b8] sm:$0xff]
    %s1188 = smul.u32 %s1098, 4
    %s1189 = smul.addr %s1188, 4
    %s1190 = scalar_lea.vmem %s2, %s1189
    %v1191 = vld [vmem:[%s1190] sm:$0xf]
    %v1192 = vld [vmem:[%s1190 + $0x4] sm:$0xf]
    %v1193 = vld [vmem:[%s1190 + $0x8] sm:$0xf]
    %v1194 = vld [vmem:[%s1190 + $0xc] sm:$0xf]
    %v1195 = vunpack.c.l.bf16 %v1191
    %v1196 = vunpack.c.l.bf16 %v1192
    %v1197 = vunpack.c.l.bf16 %v1193
    %v1198 = vunpack.c.l.bf16 %v1194
    %v1199 = vstv %s19
    %v1200 = vmul.f32 %v1195, %v1199
    %v1201 = vmul.f32 %v1196, %v1199
    %v1202 = vmul.f32 %v1197, %v1199
    %v1203 = vmul.f32 %v1198, %v1199
    %v1204 = vpack.c.bf16 %v1201, %v1200
    %v1205 = vpack.c.bf16 %v1203, %v1202
    %vm1206 = vcmask 261120
    %v1208 = vsel %vm1206, %v1204, 0
    %v1211 = vsel %vm1206, %v1205, 0
    %1213 = vmatprep.subr.bf16.mxu0 %v1141
    %1214 = vmatpush1.bf16.msra.mxu0 %v1140
    %1215 = vmatprep.subr.bf16.mxu0 %v1149
    %1216 = vmatpush1.bf16.msra.mxu0 %v1148
    %1217 = vmatprep.subr.bf16.mxu0 0
    %1218 = vmatpush1.bf16.msra.mxu0 0
    %1219 = vmatprep.subr.bf16.mxu0 0
    %1220 = vmatpush1.bf16.msra.mxu0 0
    %1221 = vmatprep.subr.bf16.mxu0 0
    %1222 = vmatpush1.bf16.msra.mxu0 0
    %1223 = vmatprep.subr.bf16.mxu0 0
    %1224 = vmatpush1.bf16.msra.mxu0 0
    %1225 = vmatprep.subr.bf16.mxu0 0
    %1226 = vmatpush1.bf16.msra.mxu0 0
    %1227 = vmatprep.subr.bf16.mxu0 0
    %1228 = vmatpush1.bf16.msra.mxu0 0
    %1229 = vmatprep.subr.bf16.mxu0 0
    %1230 = vmatpush1.bf16.msra.mxu0 0
    %1231 = vmatprep.subr.bf16.mxu0 0
    %1232 = vmatpush1.bf16.msra.mxu0 0
    %1233 = vmatprep.subr.bf16.mxu0 0
    %1234 = vmatpush1.bf16.msra.mxu0 0
    %1235 = vmatprep.subr.bf16.mxu0 0
    %1236 = vmatpush1.bf16.msra.mxu0 0
    %1237 = vmatprep.subr.bf16.mxu0 0
    %1238 = vmatpush1.bf16.msra.mxu0 0
    %1239 = vmatprep.subr.bf16.mxu0 0
    %1240 = vmatpush1.bf16.msra.mxu0 0
    %1241 = vmatprep.subr.bf16.mxu0 0
    %1242 = vmatpush1.bf16.msra.mxu0 0
    %1243 = vmatprep.subr.bf16.mxu0 0
    %1244 = vmatpush1.bf16.msra.mxu0 0
    %1245 = vmatprep.mubr.bf16.mxu0 0
    %1246 = vmatmul.mubr.bf16.gmra.mrb[0].mxu0 %v1208
    %v1247 = vpop.f32.mrb[0].mxu0
    %v1248 = vadd.f32 %v1156, %v1247
    %v1249 = vpop.f32.mrb[0].mxu0
    %v1250 = vadd.f32 %v1157, %v1249
    %v1251 = vpop.f32.mrb[0].mxu0
    %v1252 = vadd.f32 %v1164, %v1251
    %v1253 = vpop.f32.mrb[0].mxu0
    %v1254 = vadd.f32 %v1165, %v1253
    %1255 = vmatprep.mubr.bf16.mxu0 0
    %1256 = vmatmul.mubr.bf16.gmra.mrb[0].mxu0 %v1211
    %v1257 = vpop.f32.mrb[0].mxu0
    %v1258 = vadd.f32 %v1172, %v1257
    %v1259 = vpop.f32.mrb[0].mxu0
    %v1260 = vadd.f32 %v1173, %v1259
    %v1261 = vpop.f32.mrb[0].mxu0
    %v1262 = vadd.f32 %v1180, %v1261
    %v1263 = vpop.f32.mrb[0].mxu0
    %v1264 = vadd.f32 %v1181, %v1263
    %1265 = vdwg.mxu0
    %1266 = vmatprep.subr.bf16.mxu0 %v1143
    %1267 = vmatpush1.bf16.msra.mxu0 %v1142
    %1268 = vmatprep.subr.bf16.mxu0 %v1151
    %1269 = vmatpush1.bf16.msra.mxu0 %v1150
    %1270 = vmatprep.subr.bf16.mxu0 0
    %1271 = vmatpush1.bf16.msra.mxu0 0
    %1272 = vmatprep.subr.bf16.mxu0 0
    %1273 = vmatpush1.bf16.msra.mxu0 0
    %1274 = vmatprep.subr.bf16.mxu0 0
    %1275 = vmatpush1.bf16.msra.mxu0 0
    %1276 = vmatprep.subr.bf16.mxu0 0
    %1277 = vmatpush1.bf16.msra.mxu0 0
    %1278 = vmatprep.subr.bf16.mxu0 0
    %1279 = vmatpush1.bf16.msra.mxu0 0
    %1280 = vmatprep.subr.bf16.mxu0 0
    %1281 = vmatpush1.bf16.msra.mxu0 0
    %1282 = vmatprep.subr.bf16.mxu0 0
    %1283 = vmatpush1.bf16.msra.mxu0 0
    %1284 = vmatprep.subr.bf16.mxu0 0
    %1285 = vmatpush1.bf16.msra.mxu0 0
    %1286 = vmatprep.subr.bf16.mxu0 0
    %1287 = vmatpush1.bf16.msra.mxu0 0
    %1288 = vmatprep.subr.bf16.mxu0 0
    %1289 = vmatpush1.bf16.msra.mxu0 0
    %1290 = vmatprep.subr.bf16.mxu0 0
    %1291 = vmatpush1.bf16.msra.mxu0 0
    %1292 = vmatprep.subr.bf16.mxu0 0
    %1293 = vmatpush1.bf16.msra.mxu0 0
    %1294 = vmatprep.subr.bf16.mxu0 0
    %1295 = vmatpush1.bf16.msra.mxu0 0
    %1296 = vmatprep.subr.bf16.mxu0 0
    %1297 = vmatpush1.bf16.msra.mxu0 0
    %1298 = vmatprep.mubr.bf16.mxu0 0
    %1299 = vmatmul.mubr.bf16.gmra.mrb[0].mxu0 %v1208
    %v1300 = vpop.f32.mrb[0].mxu0
    %v1301 = vadd.f32 %v1158, %v1300
    %v1302 = vpop.f32.mrb[0].mxu0
    %v1303 = vadd.f32 %v1159, %v1302
    %v1304 = vpop.f32.mrb[0].mxu0
    %v1305 = vadd.f32 %v1166, %v1304
    %v1306 = vpop.f32.mrb[0].mxu0
    %v1307 = vadd.f32 %v1167, %v1306
    %1308 = vmatprep.mubr.bf16.mxu0 0
    %1309 = vmatmul.mubr.bf16.gmra.mrb[0].mxu0 %v1211
    %v1310 = vpop.f32.mrb[0].mxu0
    %v1311 = vadd.f32 %v1174, %v1310
    %v1312 = vpop.f32.mrb[0].mxu0
    %v1313 = vadd.f32 %v1175, %v1312
    %v1314 = vpop.f32.mrb[0].mxu0
    %v1315 = vadd.f32 %v1182, %v1314
    %v1316 = vpop.f32.mrb[0].mxu0
    %v1317 = vadd.f32 %v1183, %v1316
    %1318 = vdwg.mxu0
    %1319 = vmatprep.subr.bf16.mxu0 %v1145
    %1320 = vmatpush1.bf16.msra.mxu0 %v1144
    %1321 = vmatprep.subr.bf16.mxu0 %v1153
    %1322 = vmatpush1.bf16.msra.mxu0 %v1152
    %1323 = vmatprep.subr.bf16.mxu0 0
    %1324 = vmatpush1.bf16.msra.mxu0 0
    %1325 = vmatprep.subr.bf16.mxu0 0
    %1326 = vmatpush1.bf16.msra.mxu0 0
    %1327 = vmatprep.subr.bf16.mxu0 0
    %1328 = vmatpush1.bf16.msra.mxu0 0
    %1329 = vmatprep.subr.bf16.mxu0 0
    %1330 = vmatpush1.bf16.msra.mxu0 0
    %1331 = vmatprep.subr.bf16.mxu0 0
    %1332 = vmatpush1.bf16.msra.mxu0 0
    %1333 = vmatprep.subr.bf16.mxu0 0
    %1334 = vmatpush1.bf16.msra.mxu0 0
    %1335 = vmatprep.subr.bf16.mxu0 0
    %1336 = vmatpush1.bf16.msra.mxu0 0
    %1337 = vmatprep.subr.bf16.mxu0 0
    %1338 = vmatpush1.bf16.msra.mxu0 0
    %1339 = vmatprep.subr.bf16.mxu0 0
    %1340 = vmatpush1.bf16.msra.mxu0 0
    %1341 = vmatprep.subr.bf16.mxu0 0
    %1342 = vmatpush1.bf16.msra.mxu0 0
    %1343 = vmatprep.subr.bf16.mxu0 0
    %1344 = vmatpush1.bf16.msra.mxu0 0
    %1345 = vmatprep.subr.bf16.mxu0 0
    %1346 = vmatpush1.bf16.msra.mxu0 0
    %1347 = vmatprep.subr.bf16.mxu0 0
    %1348 = vmatpush1.bf16.msra.mxu0 0
    %1349 = vmatprep.subr.bf16.mxu0 0
    %1350 = vmatpush1.bf16.msra.mxu0 0
    %1351 = vmatprep.mubr.bf16.mxu0 0
    %1352 = vmatmul.mubr.bf16.gmra.mrb[0].mxu0 %v1208
    %v1353 = vpop.f32.mrb[0].mxu0
    %v1354 = vadd.f32 %v1160, %v1353
    %v1355 = vpop.f32.mrb[0].mxu0
    %v1356 = vadd.f32 %v1161, %v1355
    %v1357 = vpop.f32.mrb[0].mxu0
    %v1358 = vadd.f32 %v1168, %v1357
    %v1359 = vpop.f32.mrb[0].mxu0
    %v1360 = vadd.f32 %v1169, %v1359
    %1361 = vmatprep.mubr.bf16.mxu0 0
    %1362 = vmatmul.mubr.bf16.gmra.mrb[0].mxu0 %v1211
    %v1363 = vpop.f32.mrb[0].mxu0
    %v1364 = vadd.f32 %v1176, %v1363
    %v1365 = vpop.f32.mrb[0].mxu0
    %v1366 = vadd.f32 %v1177, %v1365
    %v1367 = vpop.f32.mrb[0].mxu0
    %v1368 = vadd.f32 %v1184, %v1367
    %v1369 = vpop.f32.mrb[0].mxu0
    %v1370 = vadd.f32 %v1185, %v1369
    %1371 = vdwg.mxu0
    %1372 = vmatprep.subr.bf16.mxu0 %v1147
    %1373 = vmatpush1.bf16.msra.mxu0 %v1146
    %1374 = vmatprep.subr.bf16.mxu0 %v1155
    %1375 = vmatpush1.bf16.msra.mxu0 %v1154
    %1376 = vmatprep.subr.bf16.mxu0 0
    %1377 = vmatpush1.bf16.msra.mxu0 0
    %1378 = vmatprep.subr.bf16.mxu0 0
    %1379 = vmatpush1.bf16.msra.mxu0 0
    %1380 = vmatprep.subr.bf16.mxu0 0
    %1381 = vmatpush1.bf16.msra.mxu0 0
    %1382 = vmatprep.subr.bf16.mxu0 0
    %1383 = vmatpush1.bf16.msra.mxu0 0
    %1384 = vmatprep.subr.bf16.mxu0 0
    %1385 = vmatpush1.bf16.msra.mxu0 0
    %1386 = vmatprep.subr.bf16.mxu0 0
    %1387 = vmatpush1.bf16.msra.mxu0 0
    %1388 = vmatprep.subr.bf16.mxu0 0
    %1389 = vmatpush1.bf16.msra.mxu0 0
    %1390 = vmatprep.subr.bf16.mxu0 0
    %1391 = vmatpush1.bf16.msra.mxu0 0
    %1392 = vmatprep.subr.bf16.mxu0 0
    %1393 = vmatpush1.bf16.msra.mxu0 0
    %1394 = vmatprep.subr.bf16.mxu0 0
    %1395 = vmatpush1.bf16.msra.mxu0 0
    %1396 = vmatprep.subr.bf16.mxu0 0
    %1397 = vmatpush1.bf16.msra.mxu0 0
    %1398 = vmatprep.subr.bf16.mxu0 0
    %1399 = vmatpush1.bf16.msra.mxu0 0
    %1400 = vmatprep.subr.bf16.mxu0 0
    %1401 = vmatpush1.bf16.msra.mxu0 0
    %1402 = vmatprep.subr.bf16.mxu0 0
    %1403 = vmatpush1.bf16.msra.mxu0 0
    %1404 = vmatprep.mubr.bf16.mxu0 0
    %1405 = vmatmul.mubr.bf16.gmra.mrb[0].mxu0 %v1208
    %v1406 = vpop.f32.mrb[0].mxu0
    %v1407 = vadd.f32 %v1162, %v1406
    %v1408 = vpop.f32.mrb[0].mxu0
    %v1409 = vadd.f32 %v1163, %v1408
    %v1410 = vpop.f32.mrb[0].mxu0
    %v1411 = vadd.f32 %v1170, %v1410
    %v1412 = vpop.f32.mrb[0].mxu0
    %v1413 = vadd.f32 %v1171, %v1412
    %1414 = vmatprep.mubr.bf16.mxu0 0
    %1415 = vmatmul.mubr.bf16.gmra.mrb[0].mxu0 %v1211
    %v1416 = vpop.f32.mrb[0].mxu0
    %v1417 = vadd.f32 %v1178, %v1416
    %v1418 = vpop.f32.mrb[0].mxu0
    %v1419 = vadd.f32 %v1179, %v1418
    %v1420 = vpop.f32.mrb[0].mxu0
    %v1421 = vadd.f32 %v1186, %v1420
    %v1422 = vpop.f32.mrb[0].mxu0
    %v1423 = vadd.f32 %v1187, %v1422
    %1424 = vdwg.mxu0
    %s1425 = smul.u32 %s1098, 32
    %s1426 = smul.addr %s1425, 8
    %s1427 = scalar_lea.vmem %s4, %s1426
    %1428 = vst [vmem:[%s1427] sm:$0xff] %v1248
    %1429 = vst [vmem:[%s1427 + $0x8] sm:$0xff] %v1250
    %1430 = vst [vmem:[%s1427 + $0x10] sm:$0xff] %v1301
    %1431 = vst [vmem:[%s1427 + $0x18] sm:$0xff] %v1303
    %1432 = vst [vmem:[%s1427 + $0x20] sm:$0xff] %v1354
    %1433 = vst [vmem:[%s1427 + $0x28] sm:$0xff] %v1356
    %1434 = vst [vmem:[%s1427 + $0x30] sm:$0xff] %v1407
    %1435 = vst [vmem:[%s1427 + $0x38] sm:$0xff] %v1409
    %1436 = vst [vmem:[%s1427 + $0x40] sm:$0xff] %v1252
    %1437 = vst [vmem:[%s1427 + $0x48] sm:$0xff] %v1254
    %1438 = vst [vmem:[%s1427 + $0x50] sm:$0xff] %v1305
    %1439 = vst [vmem:[%s1427 + $0x58] sm:$0xff] %v1307
    %1440 = vst [vmem:[%s1427 + $0x60] sm:$0xff] %v1358
    %1441 = vst [vmem:[%s1427 + $0x68] sm:$0xff] %v1360
    %1442 = vst [vmem:[%s1427 + $0x70] sm:$0xff] %v1411
    %1443 = vst [vmem:[%s1427 + $0x78] sm:$0xff] %v1413
    %1444 = vst [vmem:[%s1427 + $0x80] sm:$0xff] %v1258
    %1445 = vst [vmem:[%s1427 + $0x88] sm:$0xff] %v1260
    %1446 = vst [vmem:[%s1427 + $0x90] sm:$0xff] %v1311
    %1447 = vst [vmem:[%s1427 + $0x98] sm:$0xff] %v1313
    %1448 = vst [vmem:[%s1427 + $0xa0] sm:$0xff] %v1364
    %1449 = vst [vmem:[%s1427 + $0xa8] sm:$0xff] %v1366
    %1450 = vst [vmem:[%s1427 + $0xb0] sm:$0xff] %v1417
    %1451 = vst [vmem:[%s1427 + $0xb8] sm:$0xff] %v1419
    %1452 = vst [vmem:[%s1427 + $0xc0] sm:$0xff] %v1262
    %1453 = vst [vmem:[%s1427 + $0xc8] sm:$0xff] %v1264
    %1454 = vst [vmem:[%s1427 + $0xd0] sm:$0xff] %v1315
    %1455 = vst [vmem:[%s1427 + $0xd8] sm:$0xff] %v1317
    %1456 = vst [vmem:[%s1427 + $0xe0] sm:$0xff] %v1368
    %1457 = vst [vmem:[%s1427 + $0xe8] sm:$0xff] %v1370
    %1458 = vst [vmem:[%s1427 + $0xf0] sm:$0xff] %v1421
    %1459 = vst [vmem:[%s1427 + $0xf8] sm:$0xff] %v1423
  $region22: #{daf_forward.1} parent=0 // loop_footer
    %s1102 = sadd.s32 1, %s1098
  $region23: #{daf_forward.1} parent=0 // loop_footer_branch
    %1097 = sbr.rel target = $region19
  $region24: #{daf_forward.1} parent=0 // loop_exit
    _
  // Predicated region
  $region25: #{daf_forward.1} parent=0 // pred_check
    _
  $region26: #{daf_forward.1} parent=0 // pred_check_branch
    %1461 = sbr.rel (0) target = $region28
  $region27: #{daf_forward.1} parent=0 // pred_region
    _
  $region28: #{daf_forward.1} parent=0 // pred_fallthru
    _
  // Predicated region
  $region29: #{daf_forward.1} parent=0 // pred_check
    _
  $region30: #{daf_forward.1} parent=0 // pred_check_branch
    %1463 = sbr.rel (0) target = $region32
  $region31: #{daf_forward.1} parent=0 // pred_region
    _
  $region32: #{daf_forward.1} parent=0 // pred_fallthru
    _

</llo_original>
